<compile_context>
chip_gen: v7x
topology: tpu7x:2x2x1
jax: 0.10.0
libtpu: 0.0.40
codegen_flags: <defaults>
</compile_context>

<pallas_src>
import jax
import jax.numpy as jnp
from jax import lax
from jax.experimental import pallas as pl
from jax.experimental.pallas import tpu as pltpu

# ----------------------------- model dims -----------------------------------
BATCH = 8            # number of clips in the contrastive batch
VIDEO_DIM = 400      # fixed by the module (nn.Linear(400, hidden))
AUDIO_DIM = 768      # fixed by the module (nn.Linear(768, hidden))
TEXT_DIM = 768       # fixed by the module (nn.Linear(768, hidden))
HIDDEN = 32          # hidden_channels
OUT = 32             # out_channels (== HIDDEN, required by the tail packing)
N_MOD = 3            # video, audio, text
TAIL_ROWS = 2 * HIDDEN + 3   # [w2 | w3 | b1 b2 b3] rows per modality
LOGIT_SCALE_INIT = 2.6592

# Advisory cost estimate for XLA's scheduler (flops / transcendentals / bytes).
_FLOPS = (2 * BATCH * VIDEO_DIM * HIDDEN          # video layer-1
          + 2 * 2 * BATCH * AUDIO_DIM * HIDDEN    # audio+text layer-1
          + 2 * N_MOD * 2 * BATCH * HIDDEN * HIDDEN  # layers 2 & 3
          + N_MOD * 2 * BATCH * OUT * BATCH)      # logit matrices
_TRANSCENDENTALS = 2 * N_MOD * BATCH * BATCH + 2 * N_MOD * BATCH + N_MOD * BATCH
_BYTES = 4 * (BATCH * VIDEO_DIM + 2 * BATCH * AUDIO_DIM
              + VIDEO_DIM * HIDDEN + 2 * AUDIO_DIM * HIDDEN
              + N_MOD * TAIL_ROWS * HIDDEN + 1
              + N_MOD * BATCH * OUT + 1)


# ----------------------------- fused Pallas kernel ----------------------------
def _fused_kernel(xv_ref, xa_ref, xt_ref, w1v_ref, w1at_ref, tail_ref, scale_ref,
                  v_ref, a_ref, t_ref, loss_ref):
    """Entire Contrastive_model forward.

    xv_ref   : (B, 400)        video input (VMEM)
    xa_ref   : (B, 768)        audio input (VMEM)
    xt_ref   : (B, 768)        text  input (VMEM)
    w1v_ref  : (400, H)        video layer-1 weight (VMEM)
    w1at_ref : (2, 768, H)     [audio, text] layer-1 weights (VMEM)
    tail_ref : (3, 2H+3, H)    per modality: rows [0:H)=w2, [H:2H)=w3,
                               rows 2H,2H+1,2H+2 = b1,b2,b3 (VMEM)
    scale_ref: (1, 1)          exp(logit_scale), SMEM scalar
    v_ref/a_ref/t_ref : (B, OUT) normalized embeddings (VMEM)
    loss_ref : (1, 1)          total contrastive loss, SMEM scalar
    """
    # Layer 1 — straight from the input refs, no padding / activation copies.
    h_v = jnp.dot(xv_ref[...], w1v_ref[...], preferred_element_type=jnp.float32)
    h_a = jnp.dot(xa_ref[...], w1at_ref[0], preferred_element_type=jnp.float32)
    h_t = jnp.dot(xt_ref[...], w1at_ref[1], preferred_element_type=jnp.float32)
    h = jnp.stack([h_v, h_a, h_t], axis=0)                      # (3, B, H) -- tiny

    tail = tail_ref[...]                                        # (3, 2H+3, H)
    w2 = tail[:, 0:HIDDEN, :]                                   # (3, H, H)
    w3 = tail[:, HIDDEN:2 * HIDDEN, :]                          # (3, H, OUT)
    b1 = tail[:, 2 * HIDDEN + 0:2 * HIDDEN + 1, :]              # (3, 1, H)
    b2 = tail[:, 2 * HIDDEN + 1:2 * HIDDEN + 2, :]
    b3 = tail[:, 2 * HIDDEN + 2:2 * HIDDEN + 3, :]

    def bdot(lhs, rhs):
        # (3, m, k) @ (3, k, n) -> (3, m, n), batched over the modality axis.
        return lax.dot_general(lhs, rhs, (((2,), (1,)), ((0,), (0,))),
                               preferred_element_type=jnp.float32)

    h = jnp.maximum(h + b1, 0.0)
    h = jnp.maximum(bdot(h, w2) + b2, 0.0)
    e = bdot(h, w3) + b3

    # F.normalize: x / max(||x||, 1e-12)  ==  x * rsqrt(max(||x||^2, 1e-24))
    n2 = jnp.sum(e * e, axis=-1, keepdims=True)
    e = e * lax.rsqrt(jnp.maximum(n2, 1e-24))

    v, a, t = e[0], e[1], e[2]
    v_ref[...] = v
    a_ref[...] = a
    t_ref[...] = t

    # Similarity matrices exactly as in the reference
    # (including logits_audio_text = audio @ audio.T).
    scale = scale_ref[0, 0]                       # exp(logit_scale), precomputed
    lhs = jnp.stack([a, v, v], axis=0)            # (3, B, OUT)
    rhs = jnp.stack([a, t, a], axis=0)            # (3, B, OUT)
    logits = lax.dot_general(lhs, rhs, (((2,), (2,)), ((0,), (0,))),
                             preferred_element_type=jnp.float32) * scale  # (3,B,B)

    # Batched CLIP loss: sum over the three matrices of
    #   0.5 * (CE(rows, arange) + CE(cols, arange))
    nb = logits.shape[1]
    rm = jnp.max(logits, axis=2, keepdims=True)
    row_lse = rm + jnp.log(jnp.sum(jnp.exp(logits - rm), axis=2, keepdims=True))
    cm = jnp.max(logits, axis=1, keepdims=True)
    col_lse = cm + jnp.log(jnp.sum(jnp.exp(logits - cm), axis=1, keepdims=True))
    ri = lax.broadcasted_iota(jnp.int32, logits.shape, 1)
    ci = lax.broadcasted_iota(jnp.int32, logits.shape, 2)
    diag = jnp.where(ri == ci, logits, 0.0)
    caption_loss = jnp.sum(row_lse - jnp.sum(diag, axis=2, keepdims=True)) / nb
    image_loss = jnp.sum(col_lse - jnp.sum(diag, axis=1, keepdims=True)) / nb
    loss_ref[0, 0] = 0.5 * (caption_loss + image_loss)


# ----------------------------- wrappers --------------------------------------
def pack_params(params):
    """One-time host-side packing of the per-modality weights into stacked arrays."""
    assert HIDDEN == OUT, "tail packing assumes out_channels == hidden_channels"
    mods = ("video", "audio", "text")

    w1v = params["video"][0]                                            # (400, H)
    w1at = jnp.stack([params["audio"][0], params["text"][0]], axis=0)   # (2, 768, H)
    w2 = jnp.stack([params[m][2] for m in mods], axis=0)                # (3, H, H)
    w3 = jnp.stack([params[m][4] for m in mods], axis=0)                # (3, H, OUT)
    b = jnp.stack(
        [jnp.stack([params[m][1], params[m][3], params[m][5]], axis=0)
         for m in mods], axis=0)                                        # (3, 3, H)
    tail = jnp.concatenate([w2, w3, b], axis=1)                         # (3, 2H+3, H)
    # exp(logit_scale) precomputed once; forward output is identical.
    scale_exp = jnp.exp(params["logit_scale"]).reshape(1, 1).astype(jnp.float32)
    return {"w1v": w1v, "w1at": w1at, "tail": tail, "scale_exp": scale_exp}


@jax.jit
def contrastive_model_forward(packed, x_video, x_audio, x_text):
    batch = x_video.shape[0]
    vmem = pl.BlockSpec(memory_space=pltpu.MemorySpace.VMEM)
    smem = pl.BlockSpec(memory_space=pltpu.MemorySpace.SMEM)

    v, a, t, loss = pl.pallas_call(
        _fused_kernel,
        out_shape=(
            jax.ShapeDtypeStruct((batch, OUT), jnp.float32),
            jax.ShapeDtypeStruct((batch, OUT), jnp.float32),
            jax.ShapeDtypeStruct((batch, OUT), jnp.float32),
            jax.ShapeDtypeStruct((1, 1), jnp.float32),
        ),
        in_specs=[vmem, vmem, vmem, vmem, vmem, vmem, smem],
        out_specs=(vmem, vmem, vmem, smem),
        cost_estimate=pl.CostEstimate(
            flops=_FLOPS, transcendentals=_TRANSCENDENTALS, bytes_accessed=_BYTES),
        compiler_params=pltpu.CompilerParams(),
    )(x_video, x_audio, x_text,
      packed["w1v"], packed["w1at"], packed["tail"], packed["scale_exp"])
    return v, a, t, loss[0, 0]


# ----------------------------- pure-JAX reference -----------------------------
def _ref_mlp(x, params):
    w1, b1, w2, b2, w3, b3 = params
    h = jnp.maximum(x @ w1 + b1, 0.0)
    h = jnp.maximum(h @ w2 + b2, 0.0)
    return h @ w3 + b3


def _ref_clip_loss(sim):
    b = sim.shape[0]
    tgt = jnp.arange(b)

    def ce(lg):
        lse = jax.nn.logsumexp(lg, axis=1)
        return jnp.mean(lse - lg[jnp.arange(b), tgt])

    return 0.5 * (ce(sim) + ce(sim.T))


def _ref_forward(params, xv, xa, xt):
    v = _ref_mlp(xv, params["video"])
    a = _ref_mlp(xa, params["audio"])
    t = _ref_mlp(xt, params["text"])

    def norm(x):
        return x / jnp.maximum(jnp.linalg.norm(x, axis=1, keepdims=True), 1e-12)

    v, a, t = norm(v), norm(a), norm(t)
    s = jnp.exp(params["logit_scale"])
    loss = (_ref_clip_loss(a @ a.T * s)
            + _ref_clip_loss(v @ t.T * s)
            + _ref_clip_loss(v @ a.T * s))
    return v, a, t, loss


# ----------------------------- parameter init ---------------------------------
def _init_linear(key, fan_in, fan_out):
    # PyTorch nn.Linear default: U(-1/sqrt(fan_in), 1/sqrt(fan_in))
    kw, kb = jax.random.split(key)
    bound = 1.0 / jnp.sqrt(fan_in)
    w = jax.random.uniform(kw, (fan_in, fan_out), jnp.float32, -bound, bound)
    b = jax.random.uniform(kb, (fan_out,), jnp.float32, -bound, bound)
    return w, b


def _init_mlp(key, in_dim, hidden, out_dim):
    k1, k2, k3 = jax.random.split(key, 3)
    w1, b1 = _init_linear(k1, in_dim, hidden)
    w2, b2 = _init_linear(k2, hidden, hidden)
    w3, b3 = _init_linear(k3, hidden, out_dim)
    return (w1, b1, w2, b2, w3, b3)


def init_params(key):
    kv, ka, kt = jax.random.split(key, 3)
    return {
        "video": _init_mlp(kv, VIDEO_DIM, HIDDEN, OUT),
        "audio": _init_mlp(ka, AUDIO_DIM, HIDDEN, OUT),
        "text": _init_mlp(kt, TEXT_DIM, HIDDEN, OUT),
        "logit_scale": jnp.float32(LOGIT_SCALE_INIT),
    }


# ----------------------------- main -------------------------------------------
if __name__ == "__main__":
    root = jax.random.PRNGKey(0)
    kp, kv, ka, kt = jax.random.split(root, 4)

    params = init_params(kp)
    packed = pack_params(params)

    x_video = jax.random.normal(kv, (BATCH, VIDEO_DIM), jnp.float32)
    x_audio = jax.random.normal(ka, (BATCH, AUDIO_DIM), jnp.float32)
    x_text = jax.random.normal(kt, (BATCH, TEXT_DIM), jnp.float32)

    v_n, a_n, t_n, loss = contrastive_model_forward(packed, x_video, x_audio, x_text)
    jax.block_until_ready((v_n, a_n, t_n, loss))

    # correctness check against a pure-JAX reference of the PyTorch forward
    rv, ra, rt, rloss = _ref_forward(params, x_video, x_audio, x_text)
    assert jnp.allclose(v_n, rv, atol=1e-4, rtol=1e-4)
    assert jnp.allclose(a_n, ra, atol=1e-4, rtol=1e-4)
    assert jnp.allclose(t_n, rt, atol=1e-4, rtol=1e-4)
    assert jnp.allclose(loss, rloss, atol=1e-3, rtol=1e-3)

    print("KERNEL_OK")
</pallas_src>

<mosaic_0001>
module attributes {stable_mosaic.version = 11 : i64} {
  func.func @_fused_kernel(%arg0: memref<8x400xf32, #tpu.memory_space<vmem>>, %arg1: memref<8x768xf32, #tpu.memory_space<vmem>>, %arg2: memref<8x768xf32, #tpu.memory_space<vmem>>, %arg3: memref<400x32xf32, #tpu.memory_space<vmem>>, %arg4: memref<2x768x32xf32, #tpu.memory_space<vmem>>, %arg5: memref<3x67x32xf32, #tpu.memory_space<vmem>>, %arg6: memref<1x1xf32, #tpu.memory_space<smem>>, %arg7: memref<8x32xf32, #tpu.memory_space<vmem>>, %arg8: memref<8x32xf32, #tpu.memory_space<vmem>>, %arg9: memref<8x32xf32, #tpu.memory_space<vmem>>, %arg10: memref<1x1xf32, #tpu.memory_space<smem>>) attributes {dimension_semantics = [], scalar_prefetch = 0 : i64, scratch_operands = 0 : i64, tpu.core_type = #tpu.core_type<tc>} {
    %c0 = arith.constant 0 : index
    %c0_0 = arith.constant 0 : index
    %0 = vector.load %arg0[%c0, %c0_0] : memref<8x400xf32, #tpu.memory_space<vmem>>, vector<8x400xf32>
    %c0_1 = arith.constant 0 : index
    %c0_2 = arith.constant 0 : index
    %1 = vector.load %arg3[%c0_1, %c0_2] : memref<400x32xf32, #tpu.memory_space<vmem>>, vector<400x32xf32>
    %cst = arith.constant dense<0.000000e+00> : vector<8x32xf32>
    %2 = tpu.matmul %0, %1, %cst {dimension_numbers = #tpu.dot_dimension_numbers<[1], [0], [0], [1], [0, 0, 1, 1], [], []>} : vector<8x400xf32>, vector<400x32xf32>, vector<8x32xf32> -> vector<8x32xf32>
    %c0_3 = arith.constant 0 : index
    %c0_4 = arith.constant 0 : index
    %3 = vector.load %arg1[%c0_3, %c0_4] : memref<8x768xf32, #tpu.memory_space<vmem>>, vector<8x768xf32>
    %c0_5 = arith.constant 0 : index
    %c0_6 = arith.constant 0 : index
    %c0_7 = arith.constant 0 : index
    %4 = vector.load %arg4[%c0_5, %c0_6, %c0_7] : memref<2x768x32xf32, #tpu.memory_space<vmem>>, vector<1x768x32xf32>
    %5 = vector.shape_cast %4 : vector<1x768x32xf32> to vector<768x32xf32>
    %cst_8 = arith.constant dense<0.000000e+00> : vector<8x32xf32>
    %6 = tpu.matmul %3, %5, %cst_8 {dimension_numbers = #tpu.dot_dimension_numbers<[1], [0], [0], [1], [0, 0, 1, 1], [], []>} : vector<8x768xf32>, vector<768x32xf32>, vector<8x32xf32> -> vector<8x32xf32>
    %c0_9 = arith.constant 0 : index
    %c0_10 = arith.constant 0 : index
    %7 = vector.load %arg2[%c0_9, %c0_10] : memref<8x768xf32, #tpu.memory_space<vmem>>, vector<8x768xf32>
    %c1 = arith.constant 1 : index
    %c0_11 = arith.constant 0 : index
    %c0_12 = arith.constant 0 : index
    %8 = vector.load %arg4[%c1, %c0_11, %c0_12] : memref<2x768x32xf32, #tpu.memory_space<vmem>>, vector<1x768x32xf32>
    %9 = vector.shape_cast %8 : vector<1x768x32xf32> to vector<768x32xf32>
    %cst_13 = arith.constant dense<0.000000e+00> : vector<8x32xf32>
    %10 = tpu.matmul %7, %9, %cst_13 {dimension_numbers = #tpu.dot_dimension_numbers<[1], [0], [0], [1], [0, 0, 1, 1], [], []>} : vector<8x768xf32>, vector<768x32xf32>, vector<8x32xf32> -> vector<8x32xf32>
    %11 = vector.shape_cast %2 : vector<8x32xf32> to vector<1x8x32xf32>
    %12 = vector.shape_cast %6 : vector<8x32xf32> to vector<1x8x32xf32>
    %13 = vector.shape_cast %10 : vector<8x32xf32> to vector<1x8x32xf32>
    %14 = tpu.concatenate %11, %12, %13 in 0 : vector<1x8x32xf32>, vector<1x8x32xf32>, vector<1x8x32xf32> -> vector<3x8x32xf32>
    %c0_14 = arith.constant 0 : index
    %c0_15 = arith.constant 0 : index
    %c0_16 = arith.constant 0 : index
    %15 = vector.load %arg5[%c0_14, %c0_15, %c0_16] : memref<3x67x32xf32, #tpu.memory_space<vmem>>, vector<3x67x32xf32>
    %16 = vector.extract_strided_slice %15 {offsets = [0, 0, 0], sizes = [3, 32, 32], strides = [1, 1, 1]} : vector<3x67x32xf32> to vector<3x32x32xf32>
    %17 = vector.extract_strided_slice %15 {offsets = [0, 32, 0], sizes = [3, 32, 32], strides = [1, 1, 1]} : vector<3x67x32xf32> to vector<3x32x32xf32>
    %18 = vector.extract_strided_slice %15 {offsets = [0, 64, 0], sizes = [3, 1, 32], strides = [1, 1, 1]} : vector<3x67x32xf32> to vector<3x1x32xf32>
    %19 = vector.extract_strided_slice %15 {offsets = [0, 65, 0], sizes = [3, 1, 32], strides = [1, 1, 1]} : vector<3x67x32xf32> to vector<3x1x32xf32>
    %20 = vector.extract_strided_slice %15 {offsets = [0, 66, 0], sizes = [3, 1, 32], strides = [1, 1, 1]} : vector<3x67x32xf32> to vector<3x1x32xf32>
    %21 = vector.broadcast %18 : vector<3x1x32xf32> to vector<3x8x32xf32>
    %22 = arith.addf %14, %21 : vector<3x8x32xf32>
    %cst_17 = arith.constant 0.000000e+00 : f32
    %23 = vector.broadcast %cst_17 : f32 to vector<3x8x32xf32>
    %24 = arith.maximumf %22, %23 : vector<3x8x32xf32>
    %cst_18 = arith.constant dense<0.000000e+00> : vector<3x8x32xf32>
    %25 = tpu.matmul %24, %16, %cst_18 {dimension_numbers = #tpu.dot_dimension_numbers<[2], [1], [1], [2], [0, 0, 0, 1, 1, 2], [0], [0]>} : vector<3x8x32xf32>, vector<3x32x32xf32>, vector<3x8x32xf32> -> vector<3x8x32xf32>
    %26 = vector.broadcast %19 : vector<3x1x32xf32> to vector<3x8x32xf32>
    %27 = arith.addf %25, %26 : vector<3x8x32xf32>
    %cst_19 = arith.constant 0.000000e+00 : f32
    %28 = vector.broadcast %cst_19 : f32 to vector<3x8x32xf32>
    %29 = arith.maximumf %27, %28 : vector<3x8x32xf32>
    %cst_20 = arith.constant dense<0.000000e+00> : vector<3x8x32xf32>
    %30 = tpu.matmul %29, %17, %cst_20 {dimension_numbers = #tpu.dot_dimension_numbers<[2], [1], [1], [2], [0, 0, 0, 1, 1, 2], [0], [0]>} : vector<3x8x32xf32>, vector<3x32x32xf32>, vector<3x8x32xf32> -> vector<3x8x32xf32>
    %31 = vector.broadcast %20 : vector<3x1x32xf32> to vector<3x8x32xf32>
    %32 = arith.addf %30, %31 : vector<3x8x32xf32>
    %33 = arith.mulf %32, %32 : vector<3x8x32xf32>
    %cst_21 = arith.constant dense<0.000000e+00> : vector<3x8xf32>
    %34 = vector.multi_reduction <add>, %33, %cst_21 [2] : vector<3x8x32xf32> to vector<3x8xf32>
    %35 = vector.shape_cast %34 : vector<3x8xf32> to vector<3x8x1xf32>
    %cst_22 = arith.constant 1.000000e-24 : f32
    %36 = vector.broadcast %cst_22 : f32 to vector<3x8x1xf32>
    %37 = arith.maximumf %35, %36 : vector<3x8x1xf32>
    %38 = math.rsqrt %37 : vector<3x8x1xf32>
    %39 = vector.broadcast %38 : vector<3x8x1xf32> to vector<3x8x32xf32>
    %40 = arith.mulf %32, %39 : vector<3x8x32xf32>
    %41 = vector.extract_strided_slice %40 {offsets = [0, 0, 0], sizes = [1, 8, 32], strides = [1, 1, 1]} : vector<3x8x32xf32> to vector<1x8x32xf32>
    %42 = vector.shape_cast %41 : vector<1x8x32xf32> to vector<8x32xf32>
    %43 = vector.extract_strided_slice %40 {offsets = [1, 0, 0], sizes = [1, 8, 32], strides = [1, 1, 1]} : vector<3x8x32xf32> to vector<1x8x32xf32>
    %44 = vector.shape_cast %43 : vector<1x8x32xf32> to vector<8x32xf32>
    %45 = vector.extract_strided_slice %40 {offsets = [2, 0, 0], sizes = [1, 8, 32], strides = [1, 1, 1]} : vector<3x8x32xf32> to vector<1x8x32xf32>
    %46 = vector.shape_cast %45 : vector<1x8x32xf32> to vector<8x32xf32>
    %c0_23 = arith.constant 0 : index
    %c0_24 = arith.constant 0 : index
    %47 = vector.load %arg7[%c0_23, %c0_24] : memref<8x32xf32, #tpu.memory_space<vmem>>, vector<8x32xf32>
    tpu.vector_store %arg7[%c0_23, %c0_24], %42 {strides = array<i32>} : memref<8x32xf32, #tpu.memory_space<vmem>>, vector<8x32xf32>,
    %c0_25 = arith.constant 0 : index
    %c0_26 = arith.constant 0 : index
    %48 = vector.load %arg8[%c0_25, %c0_26] : memref<8x32xf32, #tpu.memory_space<vmem>>, vector<8x32xf32>
    tpu.vector_store %arg8[%c0_25, %c0_26], %44 {strides = array<i32>} : memref<8x32xf32, #tpu.memory_space<vmem>>, vector<8x32xf32>,
    %c0_27 = arith.constant 0 : index
    %c0_28 = arith.constant 0 : index
    %49 = vector.load %arg9[%c0_27, %c0_28] : memref<8x32xf32, #tpu.memory_space<vmem>>, vector<8x32xf32>
    tpu.vector_store %arg9[%c0_27, %c0_28], %46 {strides = array<i32>} : memref<8x32xf32, #tpu.memory_space<vmem>>, vector<8x32xf32>,
    %c0_29 = arith.constant 0 : index
    %c0_30 = arith.constant 0 : index
    %50 = memref.load %arg6[%c0_29, %c0_30] : memref<1x1xf32, #tpu.memory_space<smem>>
    %51 = vector.shape_cast %44 : vector<8x32xf32> to vector<1x8x32xf32>
    %52 = vector.shape_cast %42 : vector<8x32xf32> to vector<1x8x32xf32>
    %53 = vector.shape_cast %42 : vector<8x32xf32> to vector<1x8x32xf32>
    %54 = tpu.concatenate %51, %52, %53 in 0 : vector<1x8x32xf32>, vector<1x8x32xf32>, vector<1x8x32xf32> -> vector<3x8x32xf32>
    %55 = vector.shape_cast %44 : vector<8x32xf32> to vector<1x8x32xf32>
    %56 = vector.shape_cast %46 : vector<8x32xf32> to vector<1x8x32xf32>
    %57 = vector.shape_cast %44 : vector<8x32xf32> to vector<1x8x32xf32>
    %58 = tpu.concatenate %55, %56, %57 in 0 : vector<1x8x32xf32>, vector<1x8x32xf32>, vector<1x8x32xf32> -> vector<3x8x32xf32>
    %cst_31 = arith.constant dense<0.000000e+00> : vector<3x8x8xf32>
    %59 = tpu.matmul %54, %58, %cst_31 {dimension_numbers = #tpu.dot_dimension_numbers<[2], [2], [1], [1], [0, 0, 0, 1, 1, 1], [0], [0]>} : vector<3x8x32xf32>, vector<3x8x32xf32>, vector<3x8x8xf32> -> vector<3x8x8xf32>
    %60 = vector.broadcast %50 : f32 to vector<3x8x8xf32>
    %61 = arith.mulf %59, %60 : vector<3x8x8xf32>
    %cst_32 = arith.constant dense<0xFF800000> : vector<3x8xf32>
    %62 = vector.multi_reduction <maximumf>, %61, %cst_32 [2] : vector<3x8x8xf32> to vector<3x8xf32>
    %63 = vector.shape_cast %62 : vector<3x8xf32> to vector<3x8x1xf32>
    %64 = vector.broadcast %63 : vector<3x8x1xf32> to vector<3x8x8xf32>
    %65 = arith.subf %61, %64 : vector<3x8x8xf32>
    %66 = math.exp %65 : vector<3x8x8xf32>
    %cst_33 = arith.constant dense<0.000000e+00> : vector<3x8xf32>
    %67 = vector.multi_reduction <add>, %66, %cst_33 [2] : vector<3x8x8xf32> to vector<3x8xf32>
    %68 = vector.shape_cast %67 : vector<3x8xf32> to vector<3x8x1xf32>
    %69 = math.log %68 : vector<3x8x1xf32>
    %70 = arith.addf %63, %69 : vector<3x8x1xf32>
    %cst_34 = arith.constant dense<0xFF800000> : vector<3x8xf32>
    %71 = vector.multi_reduction <maximumf>, %61, %cst_34 [1] : vector<3x8x8xf32> to vector<3x8xf32>
    %72 = vector.shape_cast %71 : vector<3x8xf32> to vector<3x1x8xf32>
    %73 = vector.broadcast %72 : vector<3x1x8xf32> to vector<3x8x8xf32>
    %74 = arith.subf %61, %73 : vector<3x8x8xf32>
    %75 = math.exp %74 : vector<3x8x8xf32>
    %cst_35 = arith.constant dense<0.000000e+00> : vector<3x8xf32>
    %76 = vector.multi_reduction <add>, %75, %cst_35 [1] : vector<3x8x8xf32> to vector<3x8xf32>
    %77 = vector.shape_cast %76 : vector<3x8xf32> to vector<3x1x8xf32>
    %78 = math.log %77 : vector<3x1x8xf32>
    %79 = arith.addf %72, %78 : vector<3x1x8xf32>
    %80 = tpu.iota {dimensions = array<i32: 1>} : vector<3x8x8xi32>
    %81 = tpu.iota {dimensions = array<i32: 2>} : vector<3x8x8xi32>
    %82 = arith.cmpi eq, %80, %81 : vector<3x8x8xi32>
    %cst_36 = arith.constant 0.000000e+00 : f32
    %83 = vector.broadcast %cst_36 : f32 to vector<3x8x8xf32>
    %84 = arith.select %82, %61, %83 : vector<3x8x8xi1>, vector<3x8x8xf32>
    %cst_37 = arith.constant dense<0.000000e+00> : vector<3x8xf32>
    %85 = vector.multi_reduction <add>, %84, %cst_37 [2] : vector<3x8x8xf32> to vector<3x8xf32>
    %86 = vector.shape_cast %85 : vector<3x8xf32> to vector<3x8x1xf32>
    %87 = arith.subf %70, %86 : vector<3x8x1xf32>
    %88 = vector.shape_cast %87 : vector<3x8x1xf32> to vector<1x3x8x1xf32>
    %cst_38 = arith.constant dense<0.000000e+00> : vector<1xf32>
    %89 = vector.multi_reduction <add>, %88, %cst_38 [1, 2, 3] : vector<1x3x8x1xf32> to vector<1xf32>
    %90 = vector.shape_cast %89 : vector<1xf32> to vector<1x1x1x1xf32>
    %91 = vector.extract %90[0, 0, 0, 0] : f32 from vector<1x1x1x1xf32>
    %cst_39 = arith.constant 8.000000e+00 : f32
    %92 = arith.divf %91, %cst_39 : f32
    %cst_40 = arith.constant dense<0.000000e+00> : vector<3x8xf32>
    %93 = vector.multi_reduction <add>, %84, %cst_40 [1] : vector<3x8x8xf32> to vector<3x8xf32>
    %94 = vector.shape_cast %93 : vector<3x8xf32> to vector<3x1x8xf32>
    %95 = arith.subf %79, %94 : vector<3x1x8xf32>
    %96 = vector.shape_cast %95 : vector<3x1x8xf32> to vector<1x3x1x8xf32>
    %cst_41 = arith.constant dense<0.000000e+00> : vector<1xf32>
    %97 = vector.multi_reduction <add>, %96, %cst_41 [1, 2, 3] : vector<1x3x1x8xf32> to vector<1xf32>
    %98 = vector.shape_cast %97 : vector<1xf32> to vector<1x1x1x1xf32>
    %99 = vector.extract %98[0, 0, 0, 0] : f32 from vector<1x1x1x1xf32>
    %cst_42 = arith.constant 8.000000e+00 : f32
    %100 = arith.divf %99, %cst_42 : f32
    %101 = arith.addf %92, %100 : f32
    %cst_43 = arith.constant 5.000000e-01 : f32
    %102 = arith.mulf %cst_43, %101 : f32
    %c0_44 = arith.constant 0 : index
    %c0_45 = arith.constant 0 : index
    %103 = memref.load %arg10[%c0_44, %c0_45] : memref<1x1xf32, #tpu.memory_space<smem>>
    memref.store %102, %arg10[%c0_44, %c0_45] : memref<1x1xf32, #tpu.memory_space<smem>>
    return
  }
}

</mosaic_0001>

<llo_original>
// kernel: contrastive_model_forward.1
$region0: #{contrastive_model_forward.1}
  #allocation0 [shape = 'u32[]', space=smem, size = 0x4, offset = 0x4, fixed_abs, tag = 'smem constant byte address 0x4 - core index']
  #allocation1 [shape = 'u32[144,128]{1,0:T(1,128)}', space=vmem, size = 0x12000, scoped, tag = 'internal scratch']
  #allocation2 [shape = 'f32[1,1]{1,0:T(1,128)S(6)}', space=smem, size = 0x200, scoped, tag = 'scoped memory for contrastive_model_forward.1']
  %s0 = inlined_call_operand.vmem [shape: f32[8,400], index: 0, kind: input, shape index: {}]
  %s1 = inlined_call_operand.vmem [shape: f32[8,768], index: 1, kind: input, shape index: {}]
  %s2 = inlined_call_operand.vmem [shape: f32[8,768], index: 2, kind: input, shape index: {}]
  %s3 = inlined_call_operand.vmem [shape: f32[400,32], index: 3, kind: input, shape index: {}]
  %s4 = inlined_call_operand.vmem [shape: f32[2,768,32], index: 4, kind: input, shape index: {}]
  %s5 = inlined_call_operand.vmem [shape: f32[3,67,32], index: 5, kind: input, shape index: {}]
  %s6 = inlined_call_operand.<no memory space> [shape: f32[1,1], index: 6, kind: input, shape index: {}]
  %s7 = inlined_call_operand.hbm [shape: f32[8,32], index: 7, kind: output, shape index: {0}]
  %s8 = inlined_call_operand.hbm [shape: f32[8,32], index: 8, kind: output, shape index: {1}]
  %s9 = inlined_call_operand.hbm [shape: f32[8,32], index: 9, kind: output, shape index: {2}]
  %s10 = inlined_call_operand.hbm [shape: f32[1,1], index: 10, kind: output, shape index: {3}]
  %11 = xla_tuple %s7, %s8, %s9, %s10
  %s12 = sld [smem:[#allocation0]]
  $region62: #{contrastive_model_forward.1} parent=0
    _
  %s14 = ssub.s32 1, %s12
  %s15 = scalar_select 0, %s14, %s12
  %16 = sst [smem:[#allocation2]] %s6
  $region1: #{contrastive_model_forward.1} parent=0
    #allocation3 [shape = 'u8[4096]{0}', space=vmem, size = 0x1000, scoped, tag = 'output window, operand 0, single buffered']
    #allocation4 [shape = 's32[1]{0}', space=sflag, size = 0x4, scoped, tag = 'scoped memory for contrastive_model_forward.1']
    #allocation5 [shape = 's32[1]{0}', space=sflag, size = 0x4, scoped, tag = 'scoped memory for contrastive_model_forward.1']
    #allocation6 [shape = 'u8[4096]{0}', space=vmem, size = 0x1000, scoped, tag = 'output window, operand 1, single buffered']
    #allocation7 [shape = 's32[1]{0}', space=sflag, size = 0x4, scoped, tag = 'scoped memory for contrastive_model_forward.1']
    #allocation8 [shape = 'u8[4096]{0}', space=vmem, size = 0x1000, scoped, tag = 'output window, operand 2, single buffered']
    #allocation9 [shape = 'u8[512]{0}', space=smem, size = 0x200, scoped, tag = 'output window, operand 3, single buffered']
    %17 = vsyncpa [#allocation4], 0
    %18 = vsyncpa [#allocation7], 0
    %19 = vsyncpa [#allocation5], 0
    // Predicated region
    $region2: #{contrastive_model_forward.1} parent=1 // pred_check
      _
    $region3: #{contrastive_model_forward.1} parent=1 // pred_check_branch
      %21 = sbr.rel (0) target = $region5
    $region4: #{contrastive_model_forward.1} parent=1 // pred_region
      _
    $region5: #{contrastive_model_forward.1} parent=1 // pred_fallthru
      _
    // Predicated region
    $region6: #{contrastive_model_forward.1} parent=1 // pred_check
      _
    $region7: #{contrastive_model_forward.1} parent=1 // pred_check_branch
      %23 = sbr.rel (0) target = $region9
    $region8: #{contrastive_model_forward.1} parent=1 // pred_region
      _
    $region9: #{contrastive_model_forward.1} parent=1 // pred_fallthru
      _
    // Predicated region
    $region10: #{contrastive_model_forward.1} parent=1 // pred_check
      _
    $region11: #{contrastive_model_forward.1} parent=1 // pred_check_branch
      %25 = sbr.rel (0) target = $region13
    $region12: #{contrastive_model_forward.1} parent=1 // pred_region
      _
    $region13: #{contrastive_model_forward.1} parent=1 // pred_fallthru
      _
    // Predicated region
    $region14: #{contrastive_model_forward.1} parent=1 // pred_check
      _
    $region15: #{contrastive_model_forward.1} parent=1 // pred_check_branch
      %27 = sbr.rel (0) target = $region17
    $region16: #{contrastive_model_forward.1} parent=1 // pred_region
      _
    $region17: #{contrastive_model_forward.1} parent=1 // pred_fallthru
      _
    // Predicated region
    $region18: #{contrastive_model_forward.1} parent=1 // pred_check
      _
    $region19: #{contrastive_model_forward.1} parent=1 // pred_check_branch
      %29 = sbr.rel (0) target = $region21
    $region20: #{contrastive_model_forward.1} parent=1 // pred_region
      _
    $region21: #{contrastive_model_forward.1} parent=1 // pred_fallthru
      _
    // Predicated region
    $region22: #{contrastive_model_forward.1} parent=1 // pred_check
      _
    $region23: #{contrastive_model_forward.1} parent=1 // pred_check_branch
      %31 = sbr.rel (0) target = $region25
    $region24: #{contrastive_model_forward.1} parent=1 // pred_region
      _
    $region25: #{contrastive_model_forward.1} parent=1 // pred_fallthru
      _
    // Predicated region
    $region26: #{contrastive_model_forward.1} parent=1 // pred_check
      _
    $region27: #{contrastive_model_forward.1} parent=1 // pred_check_branch
      %33 = sbr.rel (0) target = $region29
    $region28: #{contrastive_model_forward.1} parent=1 // pred_region
      _
    $region29: #{contrastive_model_forward.1} parent=1 // pred_fallthru
      _
    %v34 = vld [vmem:[%s0] sm:$0xff]
    %v35 = vld [vmem:[%s0 + $0x8] sm:$0xff]
    %v36 = vld [vmem:[%s0 + $0x10] sm:$0xff]
    %v37 = vld [vmem:[%s0 + $0x18] sm:$0xff]
    %v38 = vld [vmem:[%s3] sm:$0xff]
    %v39 = vld [vmem:[%s3 + $0x8] sm:$0xff]
    %v40 = vld [vmem:[%s3 + $0x10] sm:$0xff]
    %v41 = vld [vmem:[%s3 + $0x18] sm:$0xff]
    %v42 = vld [vmem:[%s3 + $0x20] sm:$0xff]
    %v43 = vld [vmem:[%s3 + $0x28] sm:$0xff]
    %v44 = vld [vmem:[%s3 + $0x30] sm:$0xff]
    %v45 = vld [vmem:[%s3 + $0x38] sm:$0xff]
    %v46 = vld [vmem:[%s3 + $0x40] sm:$0xff]
    %v47 = vld [vmem:[%s3 + $0x48] sm:$0xff]
    %v48 = vld [vmem:[%s3 + $0x50] sm:$0xff]
    %v49 = vld [vmem:[%s3 + $0x58] sm:$0xff]
    %v50 = vld [vmem:[%s3 + $0x60] sm:$0xff]
    %v51 = vld [vmem:[%s3 + $0x68] sm:$0xff]
    %v52 = vld [vmem:[%s3 + $0x70] sm:$0xff]
    %v53 = vld [vmem:[%s3 + $0x78] sm:$0xff]
    %v54 = vld [vmem:[%s3 + $0x80] sm:$0xff]
    %v55 = vld [vmem:[%s3 + $0x88] sm:$0xff]
    %v56 = vld [vmem:[%s3 + $0x90] sm:$0xff]
    %v57 = vld [vmem:[%s3 + $0x98] sm:$0xff]
    %v58 = vld [vmem:[%s3 + $0xa0] sm:$0xff]
    %v59 = vld [vmem:[%s3 + $0xa8] sm:$0xff]
    %v60 = vld [vmem:[%s3 + $0xb0] sm:$0xff]
    %v61 = vld [vmem:[%s3 + $0xb8] sm:$0xff]
    %v62 = vld [vmem:[%s3 + $0xc0] sm:$0xff]
    %v63 = vld [vmem:[%s3 + $0xc8] sm:$0xff]
    %v64 = vld [vmem:[%s3 + $0xd0] sm:$0xff]
    %v65 = vld [vmem:[%s3 + $0xd8] sm:$0xff]
    %v66 = vld [vmem:[%s3 + $0xe0] sm:$0xff]
    %v67 = vld [vmem:[%s3 + $0xe8] sm:$0xff]
    %v68 = vld [vmem:[%s3 + $0xf0] sm:$0xff]
    %v69 = vld [vmem:[%s3 + $0xf8] sm:$0xff]
    %v70 = vld [vmem:[%s3 + $0x100] sm:$0xff]
    %v71 = vld [vmem:[%s3 + $0x108] sm:$0xff]
    %v72 = vld [vmem:[%s3 + $0x110] sm:$0xff]
    %v73 = vld [vmem:[%s3 + $0x118] sm:$0xff]
    %v74 = vld [vmem:[%s3 + $0x120] sm:$0xff]
    %v75 = vld [vmem:[%s3 + $0x128] sm:$0xff]
    %v76 = vld [vmem:[%s3 + $0x130] sm:$0xff]
    %v77 = vld [vmem:[%s3 + $0x138] sm:$0xff]
    %v78 = vld [vmem:[%s3 + $0x140] sm:$0xff]
    %v79 = vld [vmem:[%s3 + $0x148] sm:$0xff]
    %v80 = vld [vmem:[%s3 + $0x150] sm:$0xff]
    %v81 = vld [vmem:[%s3 + $0x158] sm:$0xff]
    %v82 = vld [vmem:[%s3 + $0x160] sm:$0xff]
    %v83 = vld [vmem:[%s3 + $0x168] sm:$0xff]
    %v84 = vld [vmem:[%s3 + $0x170] sm:$0xff]
    %v85 = vld [vmem:[%s3 + $0x178] sm:$0xff]
    %v86 = vld [vmem:[%s3 + $0x180] sm:$0xff]
    %v87 = vld [vmem:[%s3 + $0x188] sm:$0xff]
    %vm88 = vcmask 130048
    %v90 = vsel %vm88, %v37, 0
    %92 = vmatprep.subr.mxu0 0.0
    %93 = vmatpush1.msra.mxu0 %v38
    %94 = vmatprep.subr.mxu0 0.0
    %95 = vmatpush1.msra.mxu0 %v39
    %96 = vmatprep.subr.mxu0 0.0
    %97 = vmatpush1.msra.mxu0 %v40
    %98 = vmatprep.subr.mxu0 0.0
    %99 = vmatpush1.msra.mxu0 %v41
    %100 = vmatprep.subr.mxu0 0.0
    %101 = vmatpush1.msra.mxu0 %v42
    %102 = vmatprep.subr.mxu0 0.0
    %103 = vmatpush1.msra.mxu0 %v43
    %104 = vmatprep.subr.mxu0 0.0
    %105 = vmatpush1.msra.mxu0 %v44
    %106 = vmatprep.subr.mxu0 0.0
    %107 = vmatpush1.msra.mxu0 %v45
    %108 = vmatprep.subr.mxu0 0.0
    %109 = vmatpush1.msra.mxu0 %v46
    %110 = vmatprep.subr.mxu0 0.0
    %111 = vmatpush1.msra.mxu0 %v47
    %112 = vmatprep.subr.mxu0 0.0
    %113 = vmatpush1.msra.mxu0 %v48
    %114 = vmatprep.subr.mxu0 0.0
    %115 = vmatpush1.msra.mxu0 %v49
    %116 = vmatprep.subr.mxu0 0.0
    %117 = vmatpush1.msra.mxu0 %v50
    %118 = vmatprep.subr.mxu0 0.0
    %119 = vmatpush1.msra.mxu0 %v51
    %120 = vmatprep.subr.mxu0 0.0
    %121 = vmatpush1.msra.mxu0 %v52
    %122 = vmatprep.subr.mxu0 0.0
    %123 = vmatpush1.msra.mxu0 %v53
    %124 = vmatprep.subr.mxu0 0.0
    %125 = vmatpush1.msra.mxu0 %v54
    %126 = vmatprep.subr.mxu0 0.0
    %127 = vmatpush1.msra.mxu0 %v55
    %128 = vmatprep.subr.mxu0 0.0
    %129 = vmatpush1.msra.mxu0 %v56
    %130 = vmatprep.subr.mxu0 0.0
    %131 = vmatpush1.msra.mxu0 %v57
    %132 = vmatprep.subr.mxu0 0.0
    %133 = vmatpush1.msra.mxu0 %v58
    %134 = vmatprep.subr.mxu0 0.0
    %135 = vmatpush1.msra.mxu0 %v59
    %136 = vmatprep.subr.mxu0 0.0
    %137 = vmatpush1.msra.mxu0 %v60
    %138 = vmatprep.subr.mxu0 0.0
    %139 = vmatpush1.msra.mxu0 %v61
    %140 = vmatprep.subr.mxu0 0.0
    %141 = vmatpush1.msra.mxu0 %v62
    %142 = vmatprep.subr.mxu0 0.0
    %143 = vmatpush1.msra.mxu0 %v63
    %144 = vmatprep.subr.mxu0 0.0
    %145 = vmatpush1.msra.mxu0 %v64
    %146 = vmatprep.subr.mxu0 0.0
    %147 = vmatpush1.msra.mxu0 %v65
    %148 = vmatprep.subr.mxu0 0.0
    %149 = vmatpush1.msra.mxu0 %v66
    %150 = vmatprep.subr.mxu0 0.0
    %151 = vmatpush1.msra.mxu0 %v67
    %152 = vmatprep.subr.mxu0 0.0
    %153 = vmatpush1.msra.mxu0 %v68
    %154 = vmatprep.subr.mxu0 0.0
    %155 = vmatpush1.msra.mxu0 %v69
    %156 = vmatprep.mubr.f32.mxu0 %v35
    %157 = vmatmul.mubr.f32.gmra.mrb[0].mxu0 %v34
    %v158 = vpop.f32.mrb[0].mxu0
    %v159 = vadd.f32 0.0, %v158
    %v160 = vpop.f32.mrb[0].mxu0
    %161 = vdwg.mxu0
    %162 = vmatprep.subr.mxu0 0.0
    %163 = vmatpush1.msra.mxu0 %v70
    %164 = vmatprep.subr.mxu0 0.0
    %165 = vmatpush1.msra.mxu0 %v71
    %166 = vmatprep.subr.mxu0 0.0
    %167 = vmatpush1.msra.mxu0 %v72
    %168 = vmatprep.subr.mxu0 0.0
    %169 = vmatpush1.msra.mxu0 %v73
    %170 = vmatprep.subr.mxu0 0.0
    %171 = vmatpush1.msra.mxu0 %v74
    %172 = vmatprep.subr.mxu0 0.0
    %173 = vmatpush1.msra.mxu0 %v75
    %174 = vmatprep.subr.mxu0 0.0
    %175 = vmatpush1.msra.mxu0 %v76
    %176 = vmatprep.subr.mxu0 0.0
    %177 = vmatpush1.msra.mxu0 %v77
    %178 = vmatprep.subr.mxu0 0.0
    %179 = vmatpush1.msra.mxu0 %v78
    %180 = vmatprep.subr.mxu0 0.0
    %181 = vmatpush1.msra.mxu0 %v79
    %182 = vmatprep.subr.mxu0 0.0
    %183 = vmatpush1.msra.mxu0 %v80
    %184 = vmatprep.subr.mxu0 0.0
    %185 = vmatpush1.msra.mxu0 %v81
    %186 = vmatprep.subr.mxu0 0.0
    %187 = vmatpush1.msra.mxu0 %v82
    %188 = vmatprep.subr.mxu0 0.0
    %189 = vmatpush1.msra.mxu0 %v83
    %190 = vmatprep.subr.mxu0 0.0
    %191 = vmatpush1.msra.mxu0 %v84
    %192 = vmatprep.subr.mxu0 0.0
    %193 = vmatpush1.msra.mxu0 %v85
    %194 = vmatprep.subr.mxu0 0.0
    %195 = vmatpush1.msra.mxu0 %v86
    %196 = vmatprep.subr.mxu0 0.0
    %197 = vmatpush1.msra.mxu0 %v87
    %198 = vmatprep.subr.mxu0 0.0
    %199 = vmatpush1.msra.mxu0 0.0
    %200 = vmatprep.subr.mxu0 0.0
    %201 = vmatpush1.msra.mxu0 0.0
    %202 = vmatprep.subr.mxu0 0.0
    %203 = vmatpush1.msra.mxu0 0.0
    %204 = vmatprep.subr.mxu0 0.0
    %205 = vmatpush1.msra.mxu0 0.0
    %206 = vmatprep.subr.mxu0 0.0
    %207 = vmatpush1.msra.mxu0 0.0
    %208 = vmatprep.subr.mxu0 0.0
    %209 = vmatpush1.msra.mxu0 0.0
    %210 = vmatprep.subr.mxu0 0.0
    %211 = vmatpush1.msra.mxu0 0.0
    %212 = vmatprep.subr.mxu0 0.0
    %213 = vmatpush1.msra.mxu0 0.0
    %214 = vmatprep.subr.mxu0 0.0
    %215 = vmatpush1.msra.mxu0 0.0
    %216 = vmatprep.subr.mxu0 0.0
    %217 = vmatpush1.msra.mxu0 0.0
    %218 = vmatprep.subr.mxu0 0.0
    %219 = vmatpush1.msra.mxu0 0.0
    %220 = vmatprep.subr.mxu0 0.0
    %221 = vmatpush1.msra.mxu0 0.0
    %222 = vmatprep.subr.mxu0 0.0
    %223 = vmatpush1.msra.mxu0 0.0
    %224 = vmatprep.subr.mxu0 0.0
    %225 = vmatpush1.msra.mxu0 0.0
    %226 = vmatprep.mubr.f32.mxu0 %v90
    %227 = vmatmul.mubr.f32.gmra.mrb[0].mxu0 %v36
    %v228 = vpop.f32.mrb[0].mxu0
    %v229 = vadd.f32 %v159, %v228
    %v230 = vpop.f32.mrb[0].mxu0
    %231 = vdwg.mxu0
    %v232 = vld [vmem:[%s1] sm:$0xff]
    %v233 = vld [vmem:[%s1 + $0x8] sm:$0xff]
    %v234 = vld [vmem:[%s1 + $0x10] sm:$0xff]
    %v235 = vld [vmem:[%s1 + $0x18] sm:$0xff]
    %v236 = vld [vmem:[%s1 + $0x20] sm:$0xff]
    %v237 = vld [vmem:[%s1 + $0x28] sm:$0xff]
    %v238 = vld [vmem:[%s4] sm:$0xff]
    %v239 = vld [vmem:[%s4 + $0x8] sm:$0xff]
    %v240 = vld [vmem:[%s4 + $0x10] sm:$0xff]
    %v241 = vld [vmem:[%s4 + $0x18] sm:$0xff]
    %v242 = vld [vmem:[%s4 + $0x20] sm:$0xff]
    %v243 = vld [vmem:[%s4 + $0x28] sm:$0xff]
    %v244 = vld [vmem:[%s4 + $0x30] sm:$0xff]
    %v245 = vld [vmem:[%s4 + $0x38] sm:$0xff]
    %v246 = vld [vmem:[%s4 + $0x40] sm:$0xff]
    %v247 = vld [vmem:[%s4 + $0x48] sm:$0xff]
    %v248 = vld [vmem:[%s4 + $0x50] sm:$0xff]
    %v249 = vld [vmem:[%s4 + $0x58] sm:$0xff]
    %v250 = vld [vmem:[%s4 + $0x60] sm:$0xff]
    %v251 = vld [vmem:[%s4 + $0x68] sm:$0xff]
    %v252 = vld [vmem:[%s4 + $0x70] sm:$0xff]
    %v253 = vld [vmem:[%s4 + $0x78] sm:$0xff]
    %v254 = vld [vmem:[%s4 + $0x80] sm:$0xff]
    %v255 = vld [vmem:[%s4 + $0x88] sm:$0xff]
    %v256 = vld [vmem:[%s4 + $0x90] sm:$0xff]
    %v257 = vld [vmem:[%s4 + $0x98] sm:$0xff]
    %v258 = vld [vmem:[%s4 + $0xa0] sm:$0xff]
    %v259 = vld [vmem:[%s4 + $0xa8] sm:$0xff]
    %v260 = vld [vmem:[%s4 + $0xb0] sm:$0xff]
    %v261 = vld [vmem:[%s4 + $0xb8] sm:$0xff]
    %v262 = vld [vmem:[%s4 + $0xc0] sm:$0xff]
    %v263 = vld [vmem:[%s4 + $0xc8] sm:$0xff]
    %v264 = vld [vmem:[%s4 + $0xd0] sm:$0xff]
    %v265 = vld [vmem:[%s4 + $0xd8] sm:$0xff]
    %v266 = vld [vmem:[%s4 + $0xe0] sm:$0xff]
    %v267 = vld [vmem:[%s4 + $0xe8] sm:$0xff]
    %v268 = vld [vmem:[%s4 + $0xf0] sm:$0xff]
    %v269 = vld [vmem:[%s4 + $0xf8] sm:$0xff]
    %v270 = vld [vmem:[%s4 + $0x100] sm:$0xff]
    %v271 = vld [vmem:[%s4 + $0x108] sm:$0xff]
    %v272 = vld [vmem:[%s4 + $0x110] sm:$0xff]
    %v273 = vld [vmem:[%s4 + $0x118] sm:$0xff]
    %v274 = vld [vmem:[%s4 + $0x120] sm:$0xff]
    %v275 = vld [vmem:[%s4 + $0x128] sm:$0xff]
    %v276 = vld [vmem:[%s4 + $0x130] sm:$0xff]
    %v277 = vld [vmem:[%s4 + $0x138] sm:$0xff]
    %v278 = vld [vmem:[%s4 + $0x140] sm:$0xff]
    %v279 = vld [vmem:[%s4 + $0x148] sm:$0xff]
    %v280 = vld [vmem:[%s4 + $0x150] sm:$0xff]
    %v281 = vld [vmem:[%s4 + $0x158] sm:$0xff]
    %v282 = vld [vmem:[%s4 + $0x160] sm:$0xff]
    %v283 = vld [vmem:[%s4 + $0x168] sm:$0xff]
    %v284 = vld [vmem:[%s4 + $0x170] sm:$0xff]
    %v285 = vld [vmem:[%s4 + $0x178] sm:$0xff]
    %v286 = vld [vmem:[%s4 + $0x180] sm:$0xff]
    %v287 = vld [vmem:[%s4 + $0x188] sm:$0xff]
    %v288 = vld [vmem:[%s4 + $0x190] sm:$0xff]
    %v289 = vld [vmem:[%s4 + $0x198] sm:$0xff]
    %v290 = vld [vmem:[%s4 + $0x1a0] sm:$0xff]
    %v291 = vld [vmem:[%s4 + $0x1a8] sm:$0xff]
    %v292 = vld [vmem:[%s4 + $0x1b0] sm:$0xff]
    %v293 = vld [vmem:[%s4 + $0x1b8] sm:$0xff]
    %v294 = vld [vmem:[%s4 + $0x1c0] sm:$0xff]
    %v295 = vld [vmem:[%s4 + $0x1c8] sm:$0xff]
    %v296 = vld [vmem:[%s4 + $0x1d0] sm:$0xff]
    %v297 = vld [vmem:[%s4 + $0x1d8] sm:$0xff]
    %v298 = vld [vmem:[%s4 + $0x1e0] sm:$0xff]
    %v299 = vld [vmem:[%s4 + $0x1e8] sm:$0xff]
    %v300 = vld [vmem:[%s4 + $0x1f0] sm:$0xff]
    %v301 = vld [vmem:[%s4 + $0x1f8] sm:$0xff]
    %v302 = vld [vmem:[%s4 + $0x200] sm:$0xff]
    %v303 = vld [vmem:[%s4 + $0x208] sm:$0xff]
    %v304 = vld [vmem:[%s4 + $0x210] sm:$0xff]
    %v305 = vld [vmem:[%s4 + $0x218] sm:$0xff]
    %v306 = vld [vmem:[%s4 + $0x220] sm:$0xff]
    %v307 = vld [vmem:[%s4 + $0x228] sm:$0xff]
    %v308 = vld [vmem:[%s4 + $0x230] sm:$0xff]
    %v309 = vld [vmem:[%s4 + $0x238] sm:$0xff]
    %v310 = vld [vmem:[%s4 + $0x240] sm:$0xff]
    %v311 = vld [vmem:[%s4 + $0x248] sm:$0xff]
    %v312 = vld [vmem:[%s4 + $0x250] sm:$0xff]
    %v313 = vld [vmem:[%s4 + $0x258] sm:$0xff]
    %v314 = vld [vmem:[%s4 + $0x260] sm:$0xff]
    %v315 = vld [vmem:[%s4 + $0x268] sm:$0xff]
    %v316 = vld [vmem:[%s4 + $0x270] sm:$0xff]
    %v317 = vld [vmem:[%s4 + $0x278] sm:$0xff]
    %v318 = vld [vmem:[%s4 + $0x280] sm:$0xff]
    %v319 = vld [vmem:[%s4 + $0x288] sm:$0xff]
    %v320 = vld [vmem:[%s4 + $0x290] sm:$0xff]
    %v321 = vld [vmem:[%s4 + $0x298] sm:$0xff]
    %v322 = vld [vmem:[%s4 + $0x2a0] sm:$0xff]
    %v323 = vld [vmem:[%s4 + $0x2a8] sm:$0xff]
    %v324 = vld [vmem:[%s4 + $0x2b0] sm:$0xff]
    %v325 = vld [vmem:[%s4 + $0x2b8] sm:$0xff]
    %v326 = vld [vmem:[%s4 + $0x2c0] sm:$0xff]
    %v327 = vld [vmem:[%s4 + $0x2c8] sm:$0xff]
    %v328 = vld [vmem:[%s4 + $0x2d0] sm:$0xff]
    %v329 = vld [vmem:[%s4 + $0x2d8] sm:$0xff]
    %v330 = vld [vmem:[%s4 + $0x2e0] sm:$0xff]
    %v331 = vld [vmem:[%s4 + $0x2e8] sm:$0xff]
    %v332 = vld [vmem:[%s4 + $0x2f0] sm:$0xff]
    %v333 = vld [vmem:[%s4 + $0x2f8] sm:$0xff]
    %334 = vmatprep.subr.mxu0 0.0
    %335 = vmatpush1.msra.mxu0 %v238
    %336 = vmatprep.subr.mxu0 0.0
    %337 = vmatpush1.msra.mxu0 %v239
    %338 = vmatprep.subr.mxu0 0.0
    %339 = vmatpush1.msra.mxu0 %v240
    %340 = vmatprep.subr.mxu0 0.0
    %341 = vmatpush1.msra.mxu0 %v241
    %342 = vmatprep.subr.mxu0 0.0
    %343 = vmatpush1.msra.mxu0 %v242
    %344 = vmatprep.subr.mxu0 0.0
    %345 = vmatpush1.msra.mxu0 %v243
    %346 = vmatprep.subr.mxu0 0.0
    %347 = vmatpush1.msra.mxu0 %v244
    %348 = vmatprep.subr.mxu0 0.0
    %349 = vmatpush1.msra.mxu0 %v245
    %350 = vmatprep.subr.mxu0 0.0
    %351 = vmatpush1.msra.mxu0 %v246
    %352 = vmatprep.subr.mxu0 0.0
    %353 = vmatpush1.msra.mxu0 %v247
    %354 = vmatprep.subr.mxu0 0.0
    %355 = vmatpush1.msra.mxu0 %v248
    %356 = vmatprep.subr.mxu0 0.0
    %357 = vmatpush1.msra.mxu0 %v249
    %358 = vmatprep.subr.mxu0 0.0
    %359 = vmatpush1.msra.mxu0 %v250
    %360 = vmatprep.subr.mxu0 0.0
    %361 = vmatpush1.msra.mxu0 %v251
    %362 = vmatprep.subr.mxu0 0.0
    %363 = vmatpush1.msra.mxu0 %v252
    %364 = vmatprep.subr.mxu0 0.0
    %365 = vmatpush1.msra.mxu0 %v253
    %366 = vmatprep.subr.mxu0 0.0
    %367 = vmatpush1.msra.mxu0 %v254
    %368 = vmatprep.subr.mxu0 0.0
    %369 = vmatpush1.msra.mxu0 %v255
    %370 = vmatprep.subr.mxu0 0.0
    %371 = vmatpush1.msra.mxu0 %v256
    %372 = vmatprep.subr.mxu0 0.0
    %373 = vmatpush1.msra.mxu0 %v257
    %374 = vmatprep.subr.mxu0 0.0
    %375 = vmatpush1.msra.mxu0 %v258
    %376 = vmatprep.subr.mxu0 0.0
    %377 = vmatpush1.msra.mxu0 %v259
    %378 = vmatprep.subr.mxu0 0.0
    %379 = vmatpush1.msra.mxu0 %v260
    %380 = vmatprep.subr.mxu0 0.0
    %381 = vmatpush1.msra.mxu0 %v261
    %382 = vmatprep.subr.mxu0 0.0
    %383 = vmatpush1.msra.mxu0 %v262
    %384 = vmatprep.subr.mxu0 0.0
    %385 = vmatpush1.msra.mxu0 %v263
    %386 = vmatprep.subr.mxu0 0.0
    %387 = vmatpush1.msra.mxu0 %v264
    %388 = vmatprep.subr.mxu0 0.0
    %389 = vmatpush1.msra.mxu0 %v265
    %390 = vmatprep.subr.mxu0 0.0
    %391 = vmatpush1.msra.mxu0 %v266
    %392 = vmatprep.subr.mxu0 0.0
    %393 = vmatpush1.msra.mxu0 %v267
    %394 = vmatprep.subr.mxu0 0.0
    %395 = vmatpush1.msra.mxu0 %v268
    %396 = vmatprep.subr.mxu0 0.0
    %397 = vmatpush1.msra.mxu0 %v269
    %398 = vmatprep.mubr.f32.mxu0 %v233
    %399 = vmatmul.mubr.f32.gmra.mrb[0].mxu0 %v232
    %v400 = vpop.f32.mrb[0].mxu0
    %v401 = vadd.f32 0.0, %v400
    %v402 = vpop.f32.mrb[0].mxu0
    %403 = vdwg.mxu0
    %404 = vmatprep.subr.mxu0 0.0
    %405 = vmatpush1.msra.mxu0 %v270
    %406 = vmatprep.subr.mxu0 0.0
    %407 = vmatpush1.msra.mxu0 %v271
    %408 = vmatprep.subr.mxu0 0.0
    %409 = vmatpush1.msra.mxu0 %v272
    %410 = vmatprep.subr.mxu0 0.0
    %411 = vmatpush1.msra.mxu0 %v273
    %412 = vmatprep.subr.mxu0 0.0
    %413 = vmatpush1.msra.mxu0 %v274
    %414 = vmatprep.subr.mxu0 0.0
    %415 = vmatpush1.msra.mxu0 %v275
    %416 = vmatprep.subr.mxu0 0.0
    %417 = vmatpush1.msra.mxu0 %v276
    %418 = vmatprep.subr.mxu0 0.0
    %419 = vmatpush1.msra.mxu0 %v277
    %420 = vmatprep.subr.mxu0 0.0
    %421 = vmatpush1.msra.mxu0 %v278
    %422 = vmatprep.subr.mxu0 0.0
    %423 = vmatpush1.msra.mxu0 %v279
    %424 = vmatprep.subr.mxu0 0.0
    %425 = vmatpush1.msra.mxu0 %v280
    %426 = vmatprep.subr.mxu0 0.0
    %427 = vmatpush1.msra.mxu0 %v281
    %428 = vmatprep.subr.mxu0 0.0
    %429 = vmatpush1.msra.mxu0 %v282
    %430 = vmatprep.subr.mxu0 0.0
    %431 = vmatpush1.msra.mxu0 %v283
    %432 = vmatprep.subr.mxu0 0.0
    %433 = vmatpush1.msra.mxu0 %v284
    %434 = vmatprep.subr.mxu0 0.0
    %435 = vmatpush1.msra.mxu0 %v285
    %436 = vmatprep.subr.mxu0 0.0
    %437 = vmatpush1.msra.mxu0 %v286
    %438 = vmatprep.subr.mxu0 0.0
    %439 = vmatpush1.msra.mxu0 %v287
    %440 = vmatprep.subr.mxu0 0.0
    %441 = vmatpush1.msra.mxu0 %v288
    %442 = vmatprep.subr.mxu0 0.0
    %443 = vmatpush1.msra.mxu0 %v289
    %444 = vmatprep.subr.mxu0 0.0
    %445 = vmatpush1.msra.mxu0 %v290
    %446 = vmatprep.subr.mxu0 0.0
    %447 = vmatpush1.msra.mxu0 %v291
    %448 = vmatprep.subr.mxu0 0.0
    %449 = vmatpush1.msra.mxu0 %v292
    %450 = vmatprep.subr.mxu0 0.0
    %451 = vmatpush1.msra.mxu0 %v293
    %452 = vmatprep.subr.mxu0 0.0
    %453 = vmatpush1.msra.mxu0 %v294
    %454 = vmatprep.subr.mxu0 0.0
    %455 = vmatpush1.msra.mxu0 %v295
    %456 = vmatprep.subr.mxu0 0.0
    %457 = vmatpush1.msra.mxu0 %v296
    %458 = vmatprep.subr.mxu0 0.0
    %459 = vmatpush1.msra.mxu0 %v297
    %460 = vmatprep.subr.mxu0 0.0
    %461 = vmatpush1.msra.mxu0 %v298
    %462 = vmatprep.subr.mxu0 0.0
    %463 = vmatpush1.msra.mxu0 %v299
    %464 = vmatprep.subr.mxu0 0.0
    %465 = vmatpush1.msra.mxu0 %v300
    %466 = vmatprep.subr.mxu0 0.0
    %467 = vmatpush1.msra.mxu0 %v301
    %468 = vmatprep.mubr.f32.mxu0 %v235
    %469 = vmatmul.mubr.f32.gmra.mrb[0].mxu0 %v234
    %v470 = vpop.f32.mrb[0].mxu0
    %v471 = vadd.f32 %v401, %v470
    %v472 = vpop.f32.mrb[0].mxu0
    %473 = vdwg.mxu0
    %474 = vmatprep.subr.mxu0 0.0
    %475 = vmatpush1.msra.mxu0 %v302
    %476 = vmatprep.subr.mxu0 0.0
    %477 = vmatpush1.msra.mxu0 %v303
    %478 = vmatprep.subr.mxu0 0.0
    %479 = vmatpush1.msra.mxu0 %v304
    %480 = vmatprep.subr.mxu0 0.0
    %481 = vmatpush1.msra.mxu0 %v305
    %482 = vmatprep.subr.mxu0 0.0
    %483 = vmatpush1.msra.mxu0 %v306
    %484 = vmatprep.subr.mxu0 0.0
    %485 = vmatpush1.msra.mxu0 %v307
    %486 = vmatprep.subr.mxu0 0.0
    %487 = vmatpush1.msra.mxu0 %v308
    %488 = vmatprep.subr.mxu0 0.0
    %489 = vmatpush1.msra.mxu0 %v309
    %490 = vmatprep.subr.mxu0 0.0
    %491 = vmatpush1.msra.mxu0 %v310
    %492 = vmatprep.subr.mxu0 0.0
    %493 = vmatpush1.msra.mxu0 %v311
    %494 = vmatprep.subr.mxu0 0.0
    %495 = vmatpush1.msra.mxu0 %v312
    %496 = vmatprep.subr.mxu0 0.0
    %497 = vmatpush1.msra.mxu0 %v313
    %498 = vmatprep.subr.mxu0 0.0
    %499 = vmatpush1.msra.mxu0 %v314
    %500 = vmatprep.subr.mxu0 0.0
    %501 = vmatpush1.msra.mxu0 %v315
    %502 = vmatprep.subr.mxu0 0.0
    %503 = vmatpush1.msra.mxu0 %v316
    %504 = vmatprep.subr.mxu0 0.0
    %505 = vmatpush1.msra.mxu0 %v317
    %506 = vmatprep.subr.mxu0 0.0
    %507 = vmatpush1.msra.mxu0 %v318
    %508 = vmatprep.subr.mxu0 0.0
    %509 = vmatpush1.msra.mxu0 %v319
    %510 = vmatprep.subr.mxu0 0.0
    %511 = vmatpush1.msra.mxu0 %v320
    %512 = vmatprep.subr.mxu0 0.0
    %513 = vmatpush1.msra.mxu0 %v321
    %514 = vmatprep.subr.mxu0 0.0
    %515 = vmatpush1.msra.mxu0 %v322
    %516 = vmatprep.subr.mxu0 0.0
    %517 = vmatpush1.msra.mxu0 %v323
    %518 = vmatprep.subr.mxu0 0.0
    %519 = vmatpush1.msra.mxu0 %v324
    %520 = vmatprep.subr.mxu0 0.0
    %521 = vmatpush1.msra.mxu0 %v325
    %522 = vmatprep.subr.mxu0 0.0
    %523 = vmatpush1.msra.mxu0 %v326
    %524 = vmatprep.subr.mxu0 0.0
    %525 = vmatpush1.msra.mxu0 %v327
    %526 = vmatprep.subr.mxu0 0.0
    %527 = vmatpush1.msra.mxu0 %v328
    %528 = vmatprep.subr.mxu0 0.0
    %529 = vmatpush1.msra.mxu0 %v329
    %530 = vmatprep.subr.mxu0 0.0
    %531 = vmatpush1.msra.mxu0 %v330
    %532 = vmatprep.subr.mxu0 0.0
    %533 = vmatpush1.msra.mxu0 %v331
    %534 = vmatprep.subr.mxu0 0.0
    %535 = vmatpush1.msra.mxu0 %v332
    %536 = vmatprep.subr.mxu0 0.0
    %537 = vmatpush1.msra.mxu0 %v333
    %538 = vmatprep.mubr.f32.mxu0 %v237
    %539 = vmatmul.mubr.f32.gmra.mrb[0].mxu0 %v236
    %v540 = vpop.f32.mrb[0].mxu0
    %v541 = vadd.f32 %v471, %v540
    %v542 = vpop.f32.mrb[0].mxu0
    %543 = vdwg.mxu0
    %v544 = vld [vmem:[%s2] sm:$0xff]
    %v545 = vld [vmem:[%s2 + $0x8] sm:$0xff]
    %v546 = vld [vmem:[%s2 + $0x10] sm:$0xff]
    %v547 = vld [vmem:[%s2 + $0x18] sm:$0xff]
    %v548 = vld [vmem:[%s2 + $0x20] sm:$0xff]
    %v549 = vld [vmem:[%s2 + $0x28] sm:$0xff]
    %s550 = scalar_lea.vmem %s4, 768
    %v551 = vld [vmem:[%s550] sm:$0xff]
    %v552 = vld [vmem:[%s550 + $0x8] sm:$0xff]
    %v553 = vld [vmem:[%s550 + $0x10] sm:$0xff]
    %v554 = vld [vmem:[%s550 + $0x18] sm:$0xff]
    %v555 = vld [vmem:[%s550 + $0x20] sm:$0xff]
    %v556 = vld [vmem:[%s550 + $0x28] sm:$0xff]
    %v557 = vld [vmem:[%s550 + $0x30] sm:$0xff]
    %v558 = vld [vmem:[%s550 + $0x38] sm:$0xff]
    %v559 = vld [vmem:[%s550 + $0x40] sm:$0xff]
    %v560 = vld [vmem:[%s550 + $0x48] sm:$0xff]
    %v561 = vld [vmem:[%s550 + $0x50] sm:$0xff]
    %v562 = vld [vmem:[%s550 + $0x58] sm:$0xff]
    %v563 = vld [vmem:[%s550 + $0x60] sm:$0xff]
    %v564 = vld [vmem:[%s550 + $0x68] sm:$0xff]
    %v565 = vld [vmem:[%s550 + $0x70] sm:$0xff]
    %v566 = vld [vmem:[%s550 + $0x78] sm:$0xff]
    %v567 = vld [vmem:[%s550 + $0x80] sm:$0xff]
    %v568 = vld [vmem:[%s550 + $0x88] sm:$0xff]
    %v569 = vld [vmem:[%s550 + $0x90] sm:$0xff]
    %v570 = vld [vmem:[%s550 + $0x98] sm:$0xff]
    %v571 = vld [vmem:[%s550 + $0xa0] sm:$0xff]
    %v572 = vld [vmem:[%s550 + $0xa8] sm:$0xff]
    %v573 = vld [vmem:[%s550 + $0xb0] sm:$0xff]
    %v574 = vld [vmem:[%s550 + $0xb8] sm:$0xff]
    %v575 = vld [vmem:[%s550 + $0xc0] sm:$0xff]
    %v576 = vld [vmem:[%s550 + $0xc8] sm:$0xff]
    %v577 = vld [vmem:[%s550 + $0xd0] sm:$0xff]
    %v578 = vld [vmem:[%s550 + $0xd8] sm:$0xff]
    %v579 = vld [vmem:[%s550 + $0xe0] sm:$0xff]
    %v580 = vld [vmem:[%s550 + $0xe8] sm:$0xff]
    %v581 = vld [vmem:[%s550 + $0xf0] sm:$0xff]
    %v582 = vld [vmem:[%s550 + $0xf8] sm:$0xff]
    %v583 = vld [vmem:[%s550 + $0x100] sm:$0xff]
    %v584 = vld [vmem:[%s550 + $0x108] sm:$0xff]
    %v585 = vld [vmem:[%s550 + $0x110] sm:$0xff]
    %v586 = vld [vmem:[%s550 + $0x118] sm:$0xff]
    %v587 = vld [vmem:[%s550 + $0x120] sm:$0xff]
    %v588 = vld [vmem:[%s550 + $0x128] sm:$0xff]
    %v589 = vld [vmem:[%s550 + $0x130] sm:$0xff]
    %v590 = vld [vmem:[%s550 + $0x138] sm:$0xff]
    %v591 = vld [vmem:[%s550 + $0x140] sm:$0xff]
    %v592 = vld [vmem:[%s550 + $0x148] sm:$0xff]
    %v593 = vld [vmem:[%s550 + $0x150] sm:$0xff]
    %v594 = vld [vmem:[%s550 + $0x158] sm:$0xff]
    %v595 = vld [vmem:[%s550 + $0x160] sm:$0xff]
    %v596 = vld [vmem:[%s550 + $0x168] sm:$0xff]
    %v597 = vld [vmem:[%s550 + $0x170] sm:$0xff]
    %v598 = vld [vmem:[%s550 + $0x178] sm:$0xff]
    %v599 = vld [vmem:[%s550 + $0x180] sm:$0xff]
    %v600 = vld [vmem:[%s550 + $0x188] sm:$0xff]
    %v601 = vld [vmem:[%s550 + $0x190] sm:$0xff]
    %v602 = vld [vmem:[%s550 + $0x198] sm:$0xff]
    %v603 = vld [vmem:[%s550 + $0x1a0] sm:$0xff]
    %v604 = vld [vmem:[%s550 + $0x1a8] sm:$0xff]
    %v605 = vld [vmem:[%s550 + $0x1b0] sm:$0xff]
    %v606 = vld [vmem:[%s550 + $0x1b8] sm:$0xff]
    %v607 = vld [vmem:[%s550 + $0x1c0] sm:$0xff]
    %v608 = vld [vmem:[%s550 + $0x1c8] sm:$0xff]
    %v609 = vld [vmem:[%s550 + $0x1d0] sm:$0xff]
    %v610 = vld [vmem:[%s550 + $0x1d8] sm:$0xff]
    %v611 = vld [vmem:[%s550 + $0x1e0] sm:$0xff]
    %v612 = vld [vmem:[%s550 + $0x1e8] sm:$0xff]
    %v613 = vld [vmem:[%s550 + $0x1f0] sm:$0xff]
    %v614 = vld [vmem:[%s550 + $0x1f8] sm:$0xff]
    %v615 = vld [vmem:[%s550 + $0x200] sm:$0xff]
    %v616 = vld [vmem:[%s550 + $0x208] sm:$0xff]
    %v617 = vld [vmem:[%s550 + $0x210] sm:$0xff]
    %v618 = vld [vmem:[%s550 + $0x218] sm:$0xff]
    %v619 = vld [vmem:[%s550 + $0x220] sm:$0xff]
    %v620 = vld [vmem:[%s550 + $0x228] sm:$0xff]
    %v621 = vld [vmem:[%s550 + $0x230] sm:$0xff]
    %v622 = vld [vmem:[%s550 + $0x238] sm:$0xff]
    %v623 = vld [vmem:[%s550 + $0x240] sm:$0xff]
    %v624 = vld [vmem:[%s550 + $0x248] sm:$0xff]
    %v625 = vld [vmem:[%s550 + $0x250] sm:$0xff]
    %v626 = vld [vmem:[%s550 + $0x258] sm:$0xff]
    %v627 = vld [vmem:[%s550 + $0x260] sm:$0xff]
    %v628 = vld [vmem:[%s550 + $0x268] sm:$0xff]
    %v629 = vld [vmem:[%s550 + $0x270] sm:$0xff]
    %v630 = vld [vmem:[%s550 + $0x278] sm:$0xff]
    %v631 = vld [vmem:[%s550 + $0x280] sm:$0xff]
    %v632 = vld [vmem:[%s550 + $0x288] sm:$0xff]
    %v633 = vld [vmem:[%s550 + $0x290] sm:$0xff]
    %v634 = vld [vmem:[%s550 + $0x298] sm:$0xff]
    %v635 = vld [vmem:[%s550 + $0x2a0] sm:$0xff]
    %v636 = vld [vmem:[%s550 + $0x2a8] sm:$0xff]
    %v637 = vld [vmem:[%s550 + $0x2b0] sm:$0xff]
    %v638 = vld [vmem:[%s550 + $0x2b8] sm:$0xff]
    %v639 = vld [vmem:[%s550 + $0x2c0] sm:$0xff]
    %v640 = vld [vmem:[%s550 + $0x2c8] sm:$0xff]
    %v641 = vld [vmem:[%s550 + $0x2d0] sm:$0xff]
    %v642 = vld [vmem:[%s550 + $0x2d8] sm:$0xff]
    %v643 = vld [vmem:[%s550 + $0x2e0] sm:$0xff]
    %v644 = vld [vmem:[%s550 + $0x2e8] sm:$0xff]
    %v645 = vld [vmem:[%s550 + $0x2f0] sm:$0xff]
    %v646 = vld [vmem:[%s550 + $0x2f8] sm:$0xff]
    %647 = vmatprep.subr.mxu0 0.0
    %648 = vmatpush1.msra.mxu0 %v551
    %649 = vmatprep.subr.mxu0 0.0
    %650 = vmatpush1.msra.mxu0 %v552
    %651 = vmatprep.subr.mxu0 0.0
    %652 = vmatpush1.msra.mxu0 %v553
    %653 = vmatprep.subr.mxu0 0.0
    %654 = vmatpush1.msra.mxu0 %v554
    %655 = vmatprep.subr.mxu0 0.0
    %656 = vmatpush1.msra.mxu0 %v555
    %657 = vmatprep.subr.mxu0 0.0
    %658 = vmatpush1.msra.mxu0 %v556
    %659 = vmatprep.subr.mxu0 0.0
    %660 = vmatpush1.msra.mxu0 %v557
    %661 = vmatprep.subr.mxu0 0.0
    %662 = vmatpush1.msra.mxu0 %v558
    %663 = vmatprep.subr.mxu0 0.0
    %664 = vmatpush1.msra.mxu0 %v559
    %665 = vmatprep.subr.mxu0 0.0
    %666 = vmatpush1.msra.mxu0 %v560
    %667 = vmatprep.subr.mxu0 0.0
    %668 = vmatpush1.msra.mxu0 %v561
    %669 = vmatprep.subr.mxu0 0.0
    %670 = vmatpush1.msra.mxu0 %v562
    %671 = vmatprep.subr.mxu0 0.0
    %672 = vmatpush1.msra.mxu0 %v563
    %673 = vmatprep.subr.mxu0 0.0
    %674 = vmatpush1.msra.mxu0 %v564
    %675 = vmatprep.subr.mxu0 0.0
    %676 = vmatpush1.msra.mxu0 %v565
    %677 = vmatprep.subr.mxu0 0.0
    %678 = vmatpush1.msra.mxu0 %v566
    %679 = vmatprep.subr.mxu0 0.0
    %680 = vmatpush1.msra.mxu0 %v567
    %681 = vmatprep.subr.mxu0 0.0
    %682 = vmatpush1.msra.mxu0 %v568
    %683 = vmatprep.subr.mxu0 0.0
    %684 = vmatpush1.msra.mxu0 %v569
    %685 = vmatprep.subr.mxu0 0.0
    %686 = vmatpush1.msra.mxu0 %v570
    %687 = vmatprep.subr.mxu0 0.0
    %688 = vmatpush1.msra.mxu0 %v571
    %689 = vmatprep.subr.mxu0 0.0
    %690 = vmatpush1.msra.mxu0 %v572
    %691 = vmatprep.subr.mxu0 0.0
    %692 = vmatpush1.msra.mxu0 %v573
    %693 = vmatprep.subr.mxu0 0.0
    %694 = vmatpush1.msra.mxu0 %v574
    %695 = vmatprep.subr.mxu0 0.0
    %696 = vmatpush1.msra.mxu0 %v575
    %697 = vmatprep.subr.mxu0 0.0
    %698 = vmatpush1.msra.mxu0 %v576
    %699 = vmatprep.subr.mxu0 0.0
    %700 = vmatpush1.msra.mxu0 %v577
    %701 = vmatprep.subr.mxu0 0.0
    %702 = vmatpush1.msra.mxu0 %v578
    %703 = vmatprep.subr.mxu0 0.0
    %704 = vmatpush1.msra.mxu0 %v579
    %705 = vmatprep.subr.mxu0 0.0
    %706 = vmatpush1.msra.mxu0 %v580
    %707 = vmatprep.subr.mxu0 0.0
    %708 = vmatpush1.msra.mxu0 %v581
    %709 = vmatprep.subr.mxu0 0.0
    %710 = vmatpush1.msra.mxu0 %v582
    %711 = vmatprep.mubr.f32.mxu0 %v545
    %712 = vmatmul.mubr.f32.gmra.mrb[0].mxu0 %v544
    %v713 = vpop.f32.mrb[0].mxu0
    %v714 = vadd.f32 0.0, %v713
    %v715 = vpop.f32.mrb[0].mxu0
    %716 = vdwg.mxu0
    %717 = vmatprep.subr.mxu0 0.0
    %718 = vmatpush1.msra.mxu0 %v583
    %719 = vmatprep.subr.mxu0 0.0
    %720 = vmatpush1.msra.mxu0 %v584
    %721 = vmatprep.subr.mxu0 0.0
    %722 = vmatpush1.msra.mxu0 %v585
    %723 = vmatprep.subr.mxu0 0.0
    %724 = vmatpush1.msra.mxu0 %v586
    %725 = vmatprep.subr.mxu0 0.0
    %726 = vmatpush1.msra.mxu0 %v587
    %727 = vmatprep.subr.mxu0 0.0
    %728 = vmatpush1.msra.mxu0 %v588
    %729 = vmatprep.subr.mxu0 0.0
    %730 = vmatpush1.msra.mxu0 %v589
    %731 = vmatprep.subr.mxu0 0.0
    %732 = vmatpush1.msra.mxu0 %v590
    %733 = vmatprep.subr.mxu0 0.0
    %734 = vmatpush1.msra.mxu0 %v591
    %735 = vmatprep.subr.mxu0 0.0
    %736 = vmatpush1.msra.mxu0 %v592
    %737 = vmatprep.subr.mxu0 0.0
    %738 = vmatpush1.msra.mxu0 %v593
    %739 = vmatprep.subr.mxu0 0.0
    %740 = vmatpush1.msra.mxu0 %v594
    %741 = vmatprep.subr.mxu0 0.0
    %742 = vmatpush1.msra.mxu0 %v595
    %743 = vmatprep.subr.mxu0 0.0
    %744 = vmatpush1.msra.mxu0 %v596
    %745 = vmatprep.subr.mxu0 0.0
    %746 = vmatpush1.msra.mxu0 %v597
    %747 = vmatprep.subr.mxu0 0.0
    %748 = vmatpush1.msra.mxu0 %v598
    %749 = vmatprep.subr.mxu0 0.0
    %750 = vmatpush1.msra.mxu0 %v599
    %751 = vmatprep.subr.mxu0 0.0
    %752 = vmatpush1.msra.mxu0 %v600
    %753 = vmatprep.subr.mxu0 0.0
    %754 = vmatpush1.msra.mxu0 %v601
    %755 = vmatprep.subr.mxu0 0.0
    %756 = vmatpush1.msra.mxu0 %v602
    %757 = vmatprep.subr.mxu0 0.0
    %758 = vmatpush1.msra.mxu0 %v603
    %759 = vmatprep.subr.mxu0 0.0
    %760 = vmatpush1.msra.mxu0 %v604
    %761 = vmatprep.subr.mxu0 0.0
    %762 = vmatpush1.msra.mxu0 %v605
    %763 = vmatprep.subr.mxu0 0.0
    %764 = vmatpush1.msra.mxu0 %v606
    %765 = vmatprep.subr.mxu0 0.0
    %766 = vmatpush1.msra.mxu0 %v607
    %767 = vmatprep.subr.mxu0 0.0
    %768 = vmatpush1.msra.mxu0 %v608
    %769 = vmatprep.subr.mxu0 0.0
    %770 = vmatpush1.msra.mxu0 %v609
    %771 = vmatprep.subr.mxu0 0.0
    %772 = vmatpush1.msra.mxu0 %v610
    %773 = vmatprep.subr.mxu0 0.0
    %774 = vmatpush1.msra.mxu0 %v611
    %775 = vmatprep.subr.mxu0 0.0
    %776 = vmatpush1.msra.mxu0 %v612
    %777 = vmatprep.subr.mxu0 0.0
    %778 = vmatpush1.msra.mxu0 %v613
    %779 = vmatprep.subr.mxu0 0.0
    %780 = vmatpush1.msra.mxu0 %v614
    %781 = vmatprep.mubr.f32.mxu0 %v547
    %782 = vmatmul.mubr.f32.gmra.mrb[0].mxu0 %v546
    %v783 = vpop.f32.mrb[0].mxu0
    %v784 = vadd.f32 %v714, %v783
    %v785 = vpop.f32.mrb[0].mxu0
    %786 = vdwg.mxu0
    %787 = vmatprep.subr.mxu0 0.0
    %788 = vmatpush1.msra.mxu0 %v615
    %789 = vmatprep.subr.mxu0 0.0
    %790 = vmatpush1.msra.mxu0 %v616
    %791 = vmatprep.subr.mxu0 0.0
    %792 = vmatpush1.msra.mxu0 %v617
    %793 = vmatprep.subr.mxu0 0.0
    %794 = vmatpush1.msra.mxu0 %v618
    %795 = vmatprep.subr.mxu0 0.0
    %796 = vmatpush1.msra.mxu0 %v619
    %797 = vmatprep.subr.mxu0 0.0
    %798 = vmatpush1.msra.mxu0 %v620
    %799 = vmatprep.subr.mxu0 0.0
    %800 = vmatpush1.msra.mxu0 %v621
    %801 = vmatprep.subr.mxu0 0.0
    %802 = vmatpush1.msra.mxu0 %v622
    %803 = vmatprep.subr.mxu0 0.0
    %804 = vmatpush1.msra.mxu0 %v623
    %805 = vmatprep.subr.mxu0 0.0
    %806 = vmatpush1.msra.mxu0 %v624
    %807 = vmatprep.subr.mxu0 0.0
    %808 = vmatpush1.msra.mxu0 %v625
    %809 = vmatprep.subr.mxu0 0.0
    %810 = vmatpush1.msra.mxu0 %v626
    %811 = vmatprep.subr.mxu0 0.0
    %812 = vmatpush1.msra.mxu0 %v627
    %813 = vmatprep.subr.mxu0 0.0
    %814 = vmatpush1.msra.mxu0 %v628
    %815 = vmatprep.subr.mxu0 0.0
    %816 = vmatpush1.msra.mxu0 %v629
    %817 = vmatprep.subr.mxu0 0.0
    %818 = vmatpush1.msra.mxu0 %v630
    %819 = vmatprep.subr.mxu0 0.0
    %820 = vmatpush1.msra.mxu0 %v631
    %821 = vmatprep.subr.mxu0 0.0
    %822 = vmatpush1.msra.mxu0 %v632
    %823 = vmatprep.subr.mxu0 0.0
    %824 = vmatpush1.msra.mxu0 %v633
    %825 = vmatprep.subr.mxu0 0.0
    %826 = vmatpush1.msra.mxu0 %v634
    %827 = vmatprep.subr.mxu0 0.0
    %828 = vmatpush1.msra.mxu0 %v635
    %829 = vmatprep.subr.mxu0 0.0
    %830 = vmatpush1.msra.mxu0 %v636
    %831 = vmatprep.subr.mxu0 0.0
    %832 = vmatpush1.msra.mxu0 %v637
    %833 = vmatprep.subr.mxu0 0.0
    %834 = vmatpush1.msra.mxu0 %v638
    %835 = vmatprep.subr.mxu0 0.0
    %836 = vmatpush1.msra.mxu0 %v639
    %837 = vmatprep.subr.mxu0 0.0
    %838 = vmatpush1.msra.mxu0 %v640
    %839 = vmatprep.subr.mxu0 0.0
    %840 = vmatpush1.msra.mxu0 %v641
    %841 = vmatprep.subr.mxu0 0.0
    %842 = vmatpush1.msra.mxu0 %v642
    %843 = vmatprep.subr.mxu0 0.0
    %844 = vmatpush1.msra.mxu0 %v643
    %845 = vmatprep.subr.mxu0 0.0
    %846 = vmatpush1.msra.mxu0 %v644
    %847 = vmatprep.subr.mxu0 0.0
    %848 = vmatpush1.msra.mxu0 %v645
    %849 = vmatprep.subr.mxu0 0.0
    %850 = vmatpush1.msra.mxu0 %v646
    %851 = vmatprep.mubr.f32.mxu0 %v549
    %852 = vmatmul.mubr.f32.gmra.mrb[0].mxu0 %v548
    %v853 = vpop.f32.mrb[0].mxu0
    %v854 = vadd.f32 %v784, %v853
    %v855 = vpop.f32.mrb[0].mxu0
    %856 = vdwg.mxu0
    %v857 = vld [vmem:[%s5] sm:$0xff]
    %v858 = vld [vmem:[%s5 + $0x8] sm:$0xff]
    %v859 = vld [vmem:[%s5 + $0x10] sm:$0xff]
    %v860 = vld [vmem:[%s5 + $0x18] sm:$0xff]
    %v861 = vld [vmem:[%s5 + $0x20] sm:$0xff]
    %v862 = vld [vmem:[%s5 + $0x28] sm:$0xff]
    %v863 = vld [vmem:[%s5 + $0x30] sm:$0xff]
    %v864 = vld [vmem:[%s5 + $0x38] sm:$0xff]
    %v865 = vld [vmem:[%s5 + $0x40] sm:$0x7]
    %v866 = vld [vmem:[%s5 + $0x48] sm:$0xff]
    %v867 = vld [vmem:[%s5 + $0x50] sm:$0xff]
    %v868 = vld [vmem:[%s5 + $0x58] sm:$0xff]
    %v869 = vld [vmem:[%s5 + $0x60] sm:$0xff]
    %v870 = vld [vmem:[%s5 + $0x68] sm:$0xff]
    %v871 = vld [vmem:[%s5 + $0x70] sm:$0xff]
    %v872 = vld [vmem:[%s5 + $0x78] sm:$0xff]
    %v873 = vld [vmem:[%s5 + $0x80] sm:$0xff]
    %v874 = vld [vmem:[%s5 + $0x88] sm:$0x7]
    %v875 = vld [vmem:[%s5 + $0x90] sm:$0xff]
    %v876 = vld [vmem:[%s5 + $0x98] sm:$0xff]
    %v877 = vld [vmem:[%s5 + $0xa0] sm:$0xff]
    %v878 = vld [vmem:[%s5 + $0xa8] sm:$0xff]
    %v879 = vld [vmem:[%s5 + $0xb0] sm:$0xff]
    %v880 = vld [vmem:[%s5 + $0xb8] sm:$0xff]
    %v881 = vld [vmem:[%s5 + $0xc0] sm:$0xff]
    %v882 = vld [vmem:[%s5 + $0xc8] sm:$0xff]
    %v883 = vld [vmem:[%s5 + $0xd0] sm:$0x7]
    %v884 = vlaneseq
    %v885 = vshrl.u32 %v884, 7
    %v886 = vsub.s32 0, %v885
    %v887 = vrot.slane %v865, %v886
    %v888 = vlaneseq
    %v889 = vshrl.u32 %v888, 7
    %v890 = vsub.s32 0, %v889
    %v891 = vrot.slane %v874, %v890
    %v892 = vlaneseq
    %v893 = vshrl.u32 %v892, 7
    %v894 = vsub.s32 0, %v893
    %v895 = vrot.slane %v883, %v894
    %v896 = vadd.f32 %v229, %v887
    %v897 = vadd.f32 %v541, %v891
    %v898 = vadd.f32 %v854, %v895
    %v899 = vmax.f32 %v896, 0.0
    %v900 = vmax.f32 %v897, 0.0
    %v901 = vmax.f32 %v898, 0.0
    %v902 = vlaneseq
    %v903 = vshrl.u32 %v902, 7
    %v904 = vsub.s32 1, %v903
    %v905 = vrot.slane %v865, %v904
    %v906 = vlaneseq
    %v907 = vshrl.u32 %v906, 7
    %v908 = vsub.s32 1, %v907
    %v909 = vrot.slane %v874, %v908
    %v910 = vlaneseq
    %v911 = vshrl.u32 %v910, 7
    %v912 = vsub.s32 1, %v911
    %v913 = vrot.slane %v883, %v912
    %vm914 = vcmask 261120
    %v916 = vsel %vm914, %v899, 0
    %918 = vmatprep.subr.mxu0 0.0
    %919 = vmatpush1.msra.mxu0 %v857
    %920 = vmatprep.subr.mxu0 0.0
    %921 = vmatpush1.msra.mxu0 %v858
    %922 = vmatprep.subr.mxu0 0.0
    %923 = vmatpush1.msra.mxu0 %v859
    %924 = vmatprep.subr.mxu0 0.0
    %925 = vmatpush1.msra.mxu0 %v860
    %926 = vmatprep.subr.mxu0 0.0
    %927 = vmatpush1.msra.mxu0 0.0
    %928 = vmatprep.subr.mxu0 0.0
    %929 = vmatpush1.msra.mxu0 0.0
    %930 = vmatprep.subr.mxu0 0.0
    %931 = vmatpush1.msra.mxu0 0.0
    %932 = vmatprep.subr.mxu0 0.0
    %933 = vmatpush1.msra.mxu0 0.0
    %934 = vmatprep.subr.mxu0 0.0
    %935 = vmatpush1.msra.mxu0 0.0
    %936 = vmatprep.subr.mxu0 0.0
    %937 = vmatpush1.msra.mxu0 0.0
    %938 = vmatprep.subr.mxu0 0.0
    %939 = vmatpush1.msra.mxu0 0.0
    %940 = vmatprep.subr.mxu0 0.0
    %941 = vmatpush1.msra.mxu0 0.0
    %942 = vmatprep.subr.mxu0 0.0
    %943 = vmatpush1.msra.mxu0 0.0
    %944 = vmatprep.subr.mxu0 0.0
    %945 = vmatpush1.msra.mxu0 0.0
    %946 = vmatprep.subr.mxu0 0.0
    %947 = vmatpush1.msra.mxu0 0.0
    %948 = vmatprep.subr.mxu0 0.0
    %949 = vmatpush1.msra.mxu0 0.0
    %950 = vmatprep.subr.mxu0 0.0
    %951 = vmatpush1.msra.mxu0 0.0
    %952 = vmatprep.subr.mxu0 0.0
    %953 = vmatpush1.msra.mxu0 0.0
    %954 = vmatprep.subr.mxu0 0.0
    %955 = vmatpush1.msra.mxu0 0.0
    %956 = vmatprep.subr.mxu0 0.0
    %957 = vmatpush1.msra.mxu0 0.0
    %958 = vmatprep.subr.mxu0 0.0
    %959 = vmatpush1.msra.mxu0 0.0
    %960 = vmatprep.subr.mxu0 0.0
    %961 = vmatpush1.msra.mxu0 0.0
    %962 = vmatprep.subr.mxu0 0.0
    %963 = vmatpush1.msra.mxu0 0.0
    %964 = vmatprep.subr.mxu0 0.0
    %965 = vmatpush1.msra.mxu0 0.0
    %966 = vmatprep.subr.mxu0 0.0
    %967 = vmatpush1.msra.mxu0 0.0
    %968 = vmatprep.subr.mxu0 0.0
    %969 = vmatpush1.msra.mxu0 0.0
    %970 = vmatprep.subr.mxu0 0.0
    %971 = vmatpush1.msra.mxu0 0.0
    %972 = vmatprep.subr.mxu0 0.0
    %973 = vmatpush1.msra.mxu0 0.0
    %974 = vmatprep.subr.mxu0 0.0
    %975 = vmatpush1.msra.mxu0 0.0
    %976 = vmatprep.subr.mxu0 0.0
    %977 = vmatpush1.msra.mxu0 0.0
    %978 = vmatprep.subr.mxu0 0.0
    %979 = vmatpush1.msra.mxu0 0.0
    %980 = vmatprep.subr.mxu0 0.0
    %981 = vmatpush1.msra.mxu0 0.0
    %982 = vmatprep.mubr.f32.mxu0 0.0
    %983 = vmatmul.mubr.f32.gmra.mrb[0].mxu0 %v916
    %v984 = vpop.f32.mrb[0].mxu0
    %v985 = vadd.f32 %v905, %v984
    %v986 = vpop.f32.mrb[0].mxu0
    %987 = vdwg.mxu0
    %v989 = vsel %vm914, %v900, 0
    %991 = vmatprep.subr.mxu0 0.0
    %992 = vmatpush1.msra.mxu0 %v866
    %993 = vmatprep.subr.mxu0 0.0
    %994 = vmatpush1.msra.mxu0 %v867
    %995 = vmatprep.subr.mxu0 0.0
    %996 = vmatpush1.msra.mxu0 %v868
    %997 = vmatprep.subr.mxu0 0.0
    %998 = vmatpush1.msra.mxu0 %v869
    %999 = vmatprep.subr.mxu0 0.0
    %1000 = vmatpush1.msra.mxu0 0.0
    %1001 = vmatprep.subr.mxu0 0.0
    %1002 = vmatpush1.msra.mxu0 0.0
    %1003 = vmatprep.subr.mxu0 0.0
    %1004 = vmatpush1.msra.mxu0 0.0
    %1005 = vmatprep.subr.mxu0 0.0
    %1006 = vmatpush1.msra.mxu0 0.0
    %1007 = vmatprep.subr.mxu0 0.0
    %1008 = vmatpush1.msra.mxu0 0.0
    %1009 = vmatprep.subr.mxu0 0.0
    %1010 = vmatpush1.msra.mxu0 0.0
    %1011 = vmatprep.subr.mxu0 0.0
    %1012 = vmatpush1.msra.mxu0 0.0
    %1013 = vmatprep.subr.mxu0 0.0
    %1014 = vmatpush1.msra.mxu0 0.0
    %1015 = vmatprep.subr.mxu0 0.0
    %1016 = vmatpush1.msra.mxu0 0.0
    %1017 = vmatprep.subr.mxu0 0.0
    %1018 = vmatpush1.msra.mxu0 0.0
    %1019 = vmatprep.subr.mxu0 0.0
    %1020 = vmatpush1.msra.mxu0 0.0
    %1021 = vmatprep.subr.mxu0 0.0
    %1022 = vmatpush1.msra.mxu0 0.0
    %1023 = vmatprep.subr.mxu0 0.0
    %1024 = vmatpush1.msra.mxu0 0.0
    %1025 = vmatprep.subr.mxu0 0.0
    %1026 = vmatpush1.msra.mxu0 0.0
    %1027 = vmatprep.subr.mxu0 0.0
    %1028 = vmatpush1.msra.mxu0 0.0
    %1029 = vmatprep.subr.mxu0 0.0
    %1030 = vmatpush1.msra.mxu0 0.0
    %1031 = vmatprep.subr.mxu0 0.0
    %1032 = vmatpush1.msra.mxu0 0.0
    %1033 = vmatprep.subr.mxu0 0.0
    %1034 = vmatpush1.msra.mxu0 0.0
    %1035 = vmatprep.subr.mxu0 0.0
    %1036 = vmatpush1.msra.mxu0 0.0
    %1037 = vmatprep.subr.mxu0 0.0
    %1038 = vmatpush1.msra.mxu0 0.0
    %1039 = vmatprep.subr.mxu0 0.0
    %1040 = vmatpush1.msra.mxu0 0.0
    %1041 = vmatprep.subr.mxu0 0.0
    %1042 = vmatpush1.msra.mxu0 0.0
    %1043 = vmatprep.subr.mxu0 0.0
    %1044 = vmatpush1.msra.mxu0 0.0
    %1045 = vmatprep.subr.mxu0 0.0
    %1046 = vmatpush1.msra.mxu0 0.0
    %1047 = vmatprep.subr.mxu0 0.0
    %1048 = vmatpush1.msra.mxu0 0.0
    %1049 = vmatprep.subr.mxu0 0.0
    %1050 = vmatpush1.msra.mxu0 0.0
    %1051 = vmatprep.subr.mxu0 0.0
    %1052 = vmatpush1.msra.mxu0 0.0
    %1053 = vmatprep.subr.mxu0 0.0
    %1054 = vmatpush1.msra.mxu0 0.0
    %1055 = vmatprep.mubr.f32.mxu0 0.0
    %1056 = vmatmul.mubr.f32.gmra.mrb[0].mxu0 %v989
    %v1057 = vpop.f32.mrb[0].mxu0
    %v1058 = vadd.f32 %v909, %v1057
    %v1059 = vpop.f32.mrb[0].mxu0
    %1060 = vdwg.mxu0
    %v1062 = vsel %vm914, %v901, 0
    %1064 = vmatprep.subr.mxu0 0.0
    %1065 = vmatpush1.msra.mxu0 %v875
    %1066 = vmatprep.subr.mxu0 0.0
    %1067 = vmatpush1.msra.mxu0 %v876
    %1068 = vmatprep.subr.mxu0 0.0
    %1069 = vmatpush1.msra.mxu0 %v877
    %1070 = vmatprep.subr.mxu0 0.0
    %1071 = vmatpush1.msra.mxu0 %v878
    %1072 = vmatprep.subr.mxu0 0.0
    %1073 = vmatpush1.msra.mxu0 0.0
    %1074 = vmatprep.subr.mxu0 0.0
    %1075 = vmatpush1.msra.mxu0 0.0
    %1076 = vmatprep.subr.mxu0 0.0
    %1077 = vmatpush1.msra.mxu0 0.0
    %1078 = vmatprep.subr.mxu0 0.0
    %1079 = vmatpush1.msra.mxu0 0.0
    %1080 = vmatprep.subr.mxu0 0.0
    %1081 = vmatpush1.msra.mxu0 0.0
    %1082 = vmatprep.subr.mxu0 0.0
    %1083 = vmatpush1.msra.mxu0 0.0
    %1084 = vmatprep.subr.mxu0 0.0
    %1085 = vmatpush1.msra.mxu0 0.0
    %1086 = vmatprep.subr.mxu0 0.0
    %1087 = vmatpush1.msra.mxu0 0.0
    %1088 = vmatprep.subr.mxu0 0.0
    %1089 = vmatpush1.msra.mxu0 0.0
    %1090 = vmatprep.subr.mxu0 0.0
    %1091 = vmatpush1.msra.mxu0 0.0
    %1092 = vmatprep.subr.mxu0 0.0
    %1093 = vmatpush1.msra.mxu0 0.0
    %1094 = vmatprep.subr.mxu0 0.0
    %1095 = vmatpush1.msra.mxu0 0.0
    %1096 = vmatprep.subr.mxu0 0.0
    %1097 = vmatpush1.msra.mxu0 0.0
    %1098 = vmatprep.subr.mxu0 0.0
    %1099 = vmatpush1.msra.mxu0 0.0
    %1100 = vmatprep.subr.mxu0 0.0
    %1101 = vmatpush1.msra.mxu0 0.0
    %1102 = vmatprep.subr.mxu0 0.0
    %1103 = vmatpush1.msra.mxu0 0.0
    %1104 = vmatprep.subr.mxu0 0.0
    %1105 = vmatpush1.msra.mxu0 0.0
    %1106 = vmatprep.subr.mxu0 0.0
    %1107 = vmatpush1.msra.mxu0 0.0
    %1108 = vmatprep.subr.mxu0 0.0
    %1109 = vmatpush1.msra.mxu0 0.0
    %1110 = vmatprep.subr.mxu0 0.0
    %1111 = vmatpush1.msra.mxu0 0.0
    %1112 = vmatprep.subr.mxu0 0.0
    %1113 = vmatpush1.msra.mxu0 0.0
    %1114 = vmatprep.subr.mxu0 0.0
    %1115 = vmatpush1.msra.mxu0 0.0
    %1116 = vmatprep.subr.mxu0 0.0
    %1117 = vmatpush1.msra.mxu0 0.0
    %1118 = vmatprep.subr.mxu0 0.0
    %1119 = vmatpush1.msra.mxu0 0.0
    %1120 = vmatprep.subr.mxu0 0.0
    %1121 = vmatpush1.msra.mxu0 0.0
    %1122 = vmatprep.subr.mxu0 0.0
    %1123 = vmatpush1.msra.mxu0 0.0
    %1124 = vmatprep.subr.mxu0 0.0
    %1125 = vmatpush1.msra.mxu0 0.0
    %1126 = vmatprep.subr.mxu0 0.0
    %1127 = vmatpush1.msra.mxu0 0.0
    %1128 = vmatprep.mubr.f32.mxu0 0.0
    %1129 = vmatmul.mubr.f32.gmra.mrb[0].mxu0 %v1062
    %v1130 = vpop.f32.mrb[0].mxu0
    %v1131 = vadd.f32 %v913, %v1130
    %v1132 = vpop.f32.mrb[0].mxu0
    %1133 = vdwg.mxu0
    %v1134 = vmax.f32 %v985, 0.0
    %v1135 = vmax.f32 %v1058, 0.0
    %v1136 = vmax.f32 %v1131, 0.0
    %v1137 = vlaneseq
    %v1138 = vshrl.u32 %v1137, 7
    %v1139 = vsub.s32 2, %v1138
    %v1140 = vrot.slane %v865, %v1139
    %v1141 = vlaneseq
    %v1142 = vshrl.u32 %v1141, 7
    %v1143 = vsub.s32 2, %v1142
    %v1144 = vrot.slane %v874, %v1143
    %v1145 = vlaneseq
    %v1146 = vshrl.u32 %v1145, 7
    %v1147 = vsub.s32 2, %v1146
    %v1148 = vrot.slane %v883, %v1147
    %v1150 = vsel %vm914, %v1134, 0
    %1152 = vmatprep.subr.mxu0 0.0
    %1153 = vmatpush1.msra.mxu0 %v861
    %1154 = vmatprep.subr.mxu0 0.0
    %1155 = vmatpush1.msra.mxu0 %v862
    %1156 = vmatprep.subr.mxu0 0.0
    %1157 = vmatpush1.msra.mxu0 %v863
    %1158 = vmatprep.subr.mxu0 0.0
    %1159 = vmatpush1.msra.mxu0 %v864
    %1160 = vmatprep.subr.mxu0 0.0
    %1161 = vmatpush1.msra.mxu0 0.0
    %1162 = vmatprep.subr.mxu0 0.0
    %1163 = vmatpush1.msra.mxu0 0.0
    %1164 = vmatprep.subr.mxu0 0.0
    %1165 = vmatpush1.msra.mxu0 0.0
    %1166 = vmatprep.subr.mxu0 0.0
    %1167 = vmatpush1.msra.mxu0 0.0
    %1168 = vmatprep.subr.mxu0 0.0
    %1169 = vmatpush1.msra.mxu0 0.0
    %1170 = vmatprep.subr.mxu0 0.0
    %1171 = vmatpush1.msra.mxu0 0.0
    %1172 = vmatprep.subr.mxu0 0.0
    %1173 = vmatpush1.msra.mxu0 0.0
    %1174 = vmatprep.subr.mxu0 0.0
    %1175 = vmatpush1.msra.mxu0 0.0
    %1176 = vmatprep.subr.mxu0 0.0
    %1177 = vmatpush1.msra.mxu0 0.0
    %1178 = vmatprep.subr.mxu0 0.0
    %1179 = vmatpush1.msra.mxu0 0.0
    %1180 = vmatprep.subr.mxu0 0.0
    %1181 = vmatpush1.msra.mxu0 0.0
    %1182 = vmatprep.subr.mxu0 0.0
    %1183 = vmatpush1.msra.mxu0 0.0
    %1184 = vmatprep.subr.mxu0 0.0
    %1185 = vmatpush1.msra.mxu0 0.0
    %1186 = vmatprep.subr.mxu0 0.0
    %1187 = vmatpush1.msra.mxu0 0.0
    %1188 = vmatprep.subr.mxu0 0.0
    %1189 = vmatpush1.msra.mxu0 0.0
    %1190 = vmatprep.subr.mxu0 0.0
    %1191 = vmatpush1.msra.mxu0 0.0
    %1192 = vmatprep.subr.mxu0 0.0
    %1193 = vmatpush1.msra.mxu0 0.0
    %1194 = vmatprep.subr.mxu0 0.0
    %1195 = vmatpush1.msra.mxu0 0.0
    %1196 = vmatprep.subr.mxu0 0.0
    %1197 = vmatpush1.msra.mxu0 0.0
    %1198 = vmatprep.subr.mxu0 0.0
    %1199 = vmatpush1.msra.mxu0 0.0
    %1200 = vmatprep.subr.mxu0 0.0
    %1201 = vmatpush1.msra.mxu0 0.0
    %1202 = vmatprep.subr.mxu0 0.0
    %1203 = vmatpush1.msra.mxu0 0.0
    %1204 = vmatprep.subr.mxu0 0.0
    %1205 = vmatpush1.msra.mxu0 0.0
    %1206 = vmatprep.subr.mxu0 0.0
    %1207 = vmatpush1.msra.mxu0 0.0
    %1208 = vmatprep.subr.mxu0 0.0
    %1209 = vmatpush1.msra.mxu0 0.0
    %1210 = vmatprep.subr.mxu0 0.0
    %1211 = vmatpush1.msra.mxu0 0.0
    %1212 = vmatprep.subr.mxu0 0.0
    %1213 = vmatpush1.msra.mxu0 0.0
    %1214 = vmatprep.subr.mxu0 0.0
    %1215 = vmatpush1.msra.mxu0 0.0
    %1216 = vmatprep.mubr.f32.mxu0 0.0
    %1217 = vmatmul.mubr.f32.gmra.mrb[0].mxu0 %v1150
    %v1218 = vpop.f32.mrb[0].mxu0
    %v1219 = vadd.f32 %v1140, %v1218
    %v1220 = vpop.f32.mrb[0].mxu0
    %1221 = vdwg.mxu0
    %v1223 = vsel %vm914, %v1135, 0
    %1225 = vmatprep.subr.mxu0 0.0
    %1226 = vmatpush1.msra.mxu0 %v870
    %1227 = vmatprep.subr.mxu0 0.0
    %1228 = vmatpush1.msra.mxu0 %v871
    %1229 = vmatprep.subr.mxu0 0.0
    %1230 = vmatpush1.msra.mxu0 %v872
    %1231 = vmatprep.subr.mxu0 0.0
    %1232 = vmatpush1.msra.mxu0 %v873
    %1233 = vmatprep.subr.mxu0 0.0
    %1234 = vmatpush1.msra.mxu0 0.0
    %1235 = vmatprep.subr.mxu0 0.0
    %1236 = vmatpush1.msra.mxu0 0.0
    %1237 = vmatprep.subr.mxu0 0.0
    %1238 = vmatpush1.msra.mxu0 0.0
    %1239 = vmatprep.subr.mxu0 0.0
    %1240 = vmatpush1.msra.mxu0 0.0
    %1241 = vmatprep.subr.mxu0 0.0
    %1242 = vmatpush1.msra.mxu0 0.0
    %1243 = vmatprep.subr.mxu0 0.0
    %1244 = vmatpush1.msra.mxu0 0.0
    %1245 = vmatprep.subr.mxu0 0.0
    %1246 = vmatpush1.msra.mxu0 0.0
    %1247 = vmatprep.subr.mxu0 0.0
    %1248 = vmatpush1.msra.mxu0 0.0
    %1249 = vmatprep.subr.mxu0 0.0
    %1250 = vmatpush1.msra.mxu0 0.0
    %1251 = vmatprep.subr.mxu0 0.0
    %1252 = vmatpush1.msra.mxu0 0.0
    %1253 = vmatprep.subr.mxu0 0.0
    %1254 = vmatpush1.msra.mxu0 0.0
    %1255 = vmatprep.subr.mxu0 0.0
    %1256 = vmatpush1.msra.mxu0 0.0
    %1257 = vmatprep.subr.mxu0 0.0
    %1258 = vmatpush1.msra.mxu0 0.0
    %1259 = vmatprep.subr.mxu0 0.0
    %1260 = vmatpush1.msra.mxu0 0.0
    %1261 = vmatprep.subr.mxu0 0.0
    %1262 = vmatpush1.msra.mxu0 0.0
    %1263 = vmatprep.subr.mxu0 0.0
    %1264 = vmatpush1.msra.mxu0 0.0
    %1265 = vmatprep.subr.mxu0 0.0
    %1266 = vmatpush1.msra.mxu0 0.0
    %1267 = vmatprep.subr.mxu0 0.0
    %1268 = vmatpush1.msra.mxu0 0.0
    %1269 = vmatprep.subr.mxu0 0.0
    %1270 = vmatpush1.msra.mxu0 0.0
    %1271 = vmatprep.subr.mxu0 0.0
    %1272 = vmatpush1.msra.mxu0 0.0
    %1273 = vmatprep.subr.mxu0 0.0
    %1274 = vmatpush1.msra.mxu0 0.0
    %1275 = vmatprep.subr.mxu0 0.0
    %1276 = vmatpush1.msra.mxu0 0.0
    %1277 = vmatprep.subr.mxu0 0.0
    %1278 = vmatpush1.msra.mxu0 0.0
    %1279 = vmatprep.subr.mxu0 0.0
    %1280 = vmatpush1.msra.mxu0 0.0
    %1281 = vmatprep.subr.mxu0 0.0
    %1282 = vmatpush1.msra.mxu0 0.0
    %1283 = vmatprep.subr.mxu0 0.0
    %1284 = vmatpush1.msra.mxu0 0.0
    %1285 = vmatprep.subr.mxu0 0.0
    %1286 = vmatpush1.msra.mxu0 0.0
    %1287 = vmatprep.subr.mxu0 0.0
    %1288 = vmatpush1.msra.mxu0 0.0
    %1289 = vmatprep.mubr.f32.mxu0 0.0
    %1290 = vmatmul.mubr.f32.gmra.mrb[0].mxu0 %v1223
    %v1291 = vpop.f32.mrb[0].mxu0
    %v1292 = vadd.f32 %v1144, %v1291
    %v1293 = vpop.f32.mrb[0].mxu0
    %1294 = vdwg.mxu0
    %v1296 = vsel %vm914, %v1136, 0
    %1298 = vmatprep.subr.mxu0 0.0
    %1299 = vmatpush1.msra.mxu0 %v879
    %1300 = vmatprep.subr.mxu0 0.0
    %1301 = vmatpush1.msra.mxu0 %v880
    %1302 = vmatprep.subr.mxu0 0.0
    %1303 = vmatpush1.msra.mxu0 %v881
    %1304 = vmatprep.subr.mxu0 0.0
    %1305 = vmatpush1.msra.mxu0 %v882
    %1306 = vmatprep.subr.mxu0 0.0
    %1307 = vmatpush1.msra.mxu0 0.0
    %1308 = vmatprep.subr.mxu0 0.0
    %1309 = vmatpush1.msra.mxu0 0.0
    %1310 = vmatprep.subr.mxu0 0.0
    %1311 = vmatpush1.msra.mxu0 0.0
    %1312 = vmatprep.subr.mxu0 0.0
    %1313 = vmatpush1.msra.mxu0 0.0
    %1314 = vmatprep.subr.mxu0 0.0
    %1315 = vmatpush1.msra.mxu0 0.0
    %1316 = vmatprep.subr.mxu0 0.0
    %1317 = vmatpush1.msra.mxu0 0.0
    %1318 = vmatprep.subr.mxu0 0.0
    %1319 = vmatpush1.msra.mxu0 0.0
    %1320 = vmatprep.subr.mxu0 0.0
    %1321 = vmatpush1.msra.mxu0 0.0
    %1322 = vmatprep.subr.mxu0 0.0
    %1323 = vmatpush1.msra.mxu0 0.0
    %1324 = vmatprep.subr.mxu0 0.0
    %1325 = vmatpush1.msra.mxu0 0.0
    %1326 = vmatprep.subr.mxu0 0.0
    %1327 = vmatpush1.msra.mxu0 0.0
    %1328 = vmatprep.subr.mxu0 0.0
    %1329 = vmatpush1.msra.mxu0 0.0
    %1330 = vmatprep.subr.mxu0 0.0
    %1331 = vmatpush1.msra.mxu0 0.0
    %1332 = vmatprep.subr.mxu0 0.0
    %1333 = vmatpush1.msra.mxu0 0.0
    %1334 = vmatprep.subr.mxu0 0.0
    %1335 = vmatpush1.msra.mxu0 0.0
    %1336 = vmatprep.subr.mxu0 0.0
    %1337 = vmatpush1.msra.mxu0 0.0
    %1338 = vmatprep.subr.mxu0 0.0
    %1339 = vmatpush1.msra.mxu0 0.0
    %1340 = vmatprep.subr.mxu0 0.0
    %1341 = vmatpush1.msra.mxu0 0.0
    %1342 = vmatprep.subr.mxu0 0.0
    %1343 = vmatpush1.msra.mxu0 0.0
    %1344 = vmatprep.subr.mxu0 0.0
    %1345 = vmatpush1.msra.mxu0 0.0
    %1346 = vmatprep.subr.mxu0 0.0
    %1347 = vmatpush1.msra.mxu0 0.0
    %1348 = vmatprep.subr.mxu0 0.0
    %1349 = vmatpush1.msra.mxu0 0.0
    %1350 = vmatprep.subr.mxu0 0.0
    %1351 = vmatpush1.msra.mxu0 0.0
    %1352 = vmatprep.subr.mxu0 0.0
    %1353 = vmatpush1.msra.mxu0 0.0
    %1354 = vmatprep.subr.mxu0 0.0
    %1355 = vmatpush1.msra.mxu0 0.0
    %1356 = vmatprep.subr.mxu0 0.0
    %1357 = vmatpush1.msra.mxu0 0.0
    %1358 = vmatprep.subr.mxu0 0.0
    %1359 = vmatpush1.msra.mxu0 0.0
    %1360 = vmatprep.subr.mxu0 0.0
    %1361 = vmatpush1.msra.mxu0 0.0
    %1362 = vmatprep.mubr.f32.mxu0 0.0
    %1363 = vmatmul.mubr.f32.gmra.mrb[0].mxu0 %v1296
    %v1364 = vpop.f32.mrb[0].mxu0
    %v1365 = vadd.f32 %v1148, %v1364
    %v1366 = vpop.f32.mrb[0].mxu0
    %1367 = vdwg.mxu0
    %v1368 = vmul.f32 %v1219, %v1219
    %v1369 = vmul.f32 %v1292, %v1292
    %v1370 = vmul.f32 %v1365, %v1365
    %v1371 = vsel %vm914, %v1368, 0.0
    %1372 = vadd.xlane.f32.xlu0 %v1371
    %v1373 = vpop.xlane.xlu0 %1372
    %v1374 = vsel %vm914, %v1369, 0.0
    %1375 = vadd.xlane.f32.xlu0 %v1374
    %v1376 = vpop.xlane.xlu0 %1375
    %v1377 = vsel %vm914, %v1370, 0.0
    %1378 = vadd.xlane.f32.xlu0 %v1377
    %v1379 = vpop.xlane.xlu0 %1378
    %v1380 = vmax.f32 %v1373, 1e-24
    %v1381 = vmax.f32 %v1376, 1e-24
    %v1382 = vmax.f32 %v1379, 1e-24
    %v1383 = vrsqrt.pop %v1380
    %v1384 = vrsqrt.pop %v1381
    %v1385 = vrsqrt.pop %v1382
    %v1386 = vmul.f32 %v1219, %v1383
    %v1387 = vmul.f32 %v1292, %v1384
    %v1388 = vmul.f32 %v1365, %v1385
    %1389 = vst.msk [vmem:[#allocation3] sm:$0xff] %vm914, %v1386
    %1390 = vst.msk [vmem:[#allocation6] sm:$0xff] %vm914, %v1387
    %1391 = vst.msk [vmem:[#allocation8] sm:$0xff] %vm914, %v1388
    %s1392 = sld [smem:[#allocation2]]
    %v1394 = vsel %vm914, %v1387, 0
    %1396 = vmatprep.subr.mxu0 0.0
    %1397 = vmatpush1.xpose.msra.mxu0 %v1394
    %1398 = vmatprep.subr.mxu0 0.0
    %1399 = vmatpush1.xpose.msra.mxu0 0.0
    %1400 = vmatprep.subr.mxu0 0.0
    %1401 = vmatpush1.xpose.msra.mxu0 0.0
    %1402 = vmatprep.subr.mxu0 0.0
    %1403 = vmatpush1.xpose.msra.mxu0 0.0
    %1404 = vmatprep.subr.mxu0 0.0
    %1405 = vmatpush1.xpose.msra.mxu0 0.0
    %1406 = vmatprep.subr.mxu0 0.0
    %1407 = vmatpush1.xpose.msra.mxu0 0.0
    %1408 = vmatprep.subr.mxu0 0.0
    %1409 = vmatpush1.xpose.msra.mxu0 0.0
    %1410 = vmatprep.subr.mxu0 0.0
    %1411 = vmatpush1.xpose.msra.mxu0 0.0
    %1412 = vmatprep.subr.mxu0 0.0
    %1413 = vmatpush1.xpose.msra.mxu0 0.0
    %1414 = vmatprep.subr.mxu0 0.0
    %1415 = vmatpush1.xpose.msra.mxu0 0.0
    %1416 = vmatprep.subr.mxu0 0.0
    %1417 = vmatpush1.xpose.msra.mxu0 0.0
    %1418 = vmatprep.subr.mxu0 0.0
    %1419 = vmatpush1.xpose.msra.mxu0 0.0
    %1420 = vmatprep.subr.mxu0 0.0
    %1421 = vmatpush1.xpose.msra.mxu0 0.0
    %1422 = vmatprep.subr.mxu0 0.0
    %1423 = vmatpush1.xpose.msra.mxu0 0.0
    %1424 = vmatprep.subr.mxu0 0.0
    %1425 = vmatpush1.xpose.msra.mxu0 0.0
    %1426 = vmatprep.subr.mxu0 0.0
    %1427 = vmatpush1.xpose.msra.mxu0 0.0
    %1428 = vmatprep.subr.mxu0 0.0
    %1429 = vmatpush1.xpose.msra.mxu0 0.0
    %1430 = vmatprep.subr.mxu0 0.0
    %1431 = vmatpush1.xpose.msra.mxu0 0.0
    %1432 = vmatprep.subr.mxu0 0.0
    %1433 = vmatpush1.xpose.msra.mxu0 0.0
    %1434 = vmatprep.subr.mxu0 0.0
    %1435 = vmatpush1.xpose.msra.mxu0 0.0
    %1436 = vmatprep.subr.mxu0 0.0
    %1437 = vmatpush1.xpose.msra.mxu0 0.0
    %1438 = vmatprep.subr.mxu0 0.0
    %1439 = vmatpush1.xpose.msra.mxu0 0.0
    %1440 = vmatprep.subr.mxu0 0.0
    %1441 = vmatpush1.xpose.msra.mxu0 0.0
    %1442 = vmatprep.subr.mxu0 0.0
    %1443 = vmatpush1.xpose.msra.mxu0 0.0
    %1444 = vmatprep.subr.mxu0 0.0
    %1445 = vmatpush1.xpose.msra.mxu0 0.0
    %1446 = vmatprep.subr.mxu0 0.0
    %1447 = vmatpush1.xpose.msra.mxu0 0.0
    %1448 = vmatprep.subr.mxu0 0.0
    %1449 = vmatpush1.xpose.msra.mxu0 0.0
    %1450 = vmatprep.subr.mxu0 0.0
    %1451 = vmatpush1.xpose.msra.mxu0 0.0
    %1452 = vmatprep.subr.mxu0 0.0
    %1453 = vmatpush1.xpose.msra.mxu0 0.0
    %1454 = vmatprep.subr.mxu0 0.0
    %1455 = vmatpush1.xpose.msra.mxu0 0.0
    %1456 = vmatprep.subr.mxu0 0.0
    %1457 = vmatpush1.xpose.msra.mxu0 0.0
    %1458 = vmatprep.subr.mxu0 0.0
    %1459 = vmatpush1.xpose.msra.mxu0 0.0
    %1460 = vmatprep.mubr.f32.mxu0 0.0
    %1461 = vmatmul.mubr.f32.gmra.mrb[0].mxu0 %v1394
    %v1462 = vpop.f32.mrb[0].mxu0
    %v1463 = vadd.f32 0.0, %v1462
    %v1464 = vpop.f32.mrb[0].mxu0
    %1465 = vdwg.mxu0
    %v1467 = vsel %vm914, %v1386, 0
    %v1470 = vsel %vm914, %v1388, 0
    %1472 = vmatprep.subr.mxu0 0.0
    %1473 = vmatpush1.xpose.msra.mxu0 %v1470
    %1474 = vmatprep.subr.mxu0 0.0
    %1475 = vmatpush1.xpose.msra.mxu0 0.0
    %1476 = vmatprep.subr.mxu0 0.0
    %1477 = vmatpush1.xpose.msra.mxu0 0.0
    %1478 = vmatprep.subr.mxu0 0.0
    %1479 = vmatpush1.xpose.msra.mxu0 0.0
    %1480 = vmatprep.subr.mxu0 0.0
    %1481 = vmatpush1.xpose.msra.mxu0 0.0
    %1482 = vmatprep.subr.mxu0 0.0
    %1483 = vmatpush1.xpose.msra.mxu0 0.0
    %1484 = vmatprep.subr.mxu0 0.0
    %1485 = vmatpush1.xpose.msra.mxu0 0.0
    %1486 = vmatprep.subr.mxu0 0.0
    %1487 = vmatpush1.xpose.msra.mxu0 0.0
    %1488 = vmatprep.subr.mxu0 0.0
    %1489 = vmatpush1.xpose.msra.mxu0 0.0
    %1490 = vmatprep.subr.mxu0 0.0
    %1491 = vmatpush1.xpose.msra.mxu0 0.0
    %1492 = vmatprep.subr.mxu0 0.0
    %1493 = vmatpush1.xpose.msra.mxu0 0.0
    %1494 = vmatprep.subr.mxu0 0.0
    %1495 = vmatpush1.xpose.msra.mxu0 0.0
    %1496 = vmatprep.subr.mxu0 0.0
    %1497 = vmatpush1.xpose.msra.mxu0 0.0
    %1498 = vmatprep.subr.mxu0 0.0
    %1499 = vmatpush1.xpose.msra.mxu0 0.0
    %1500 = vmatprep.subr.mxu0 0.0
    %1501 = vmatpush1.xpose.msra.mxu0 0.0
    %1502 = vmatprep.subr.mxu0 0.0
    %1503 = vmatpush1.xpose.msra.mxu0 0.0
    %1504 = vmatprep.subr.mxu0 0.0
    %1505 = vmatpush1.xpose.msra.mxu0 0.0
    %1506 = vmatprep.subr.mxu0 0.0
    %1507 = vmatpush1.xpose.msra.mxu0 0.0
    %1508 = vmatprep.subr.mxu0 0.0
    %1509 = vmatpush1.xpose.msra.mxu0 0.0
    %1510 = vmatprep.subr.mxu0 0.0
    %1511 = vmatpush1.xpose.msra.mxu0 0.0
    %1512 = vmatprep.subr.mxu0 0.0
    %1513 = vmatpush1.xpose.msra.mxu0 0.0
    %1514 = vmatprep.subr.mxu0 0.0
    %1515 = vmatpush1.xpose.msra.mxu0 0.0
    %1516 = vmatprep.subr.mxu0 0.0
    %1517 = vmatpush1.xpose.msra.mxu0 0.0
    %1518 = vmatprep.subr.mxu0 0.0
    %1519 = vmatpush1.xpose.msra.mxu0 0.0
    %1520 = vmatprep.subr.mxu0 0.0
    %1521 = vmatpush1.xpose.msra.mxu0 0.0
    %1522 = vmatprep.subr.mxu0 0.0
    %1523 = vmatpush1.xpose.msra.mxu0 0.0
    %1524 = vmatprep.subr.mxu0 0.0
    %1525 = vmatpush1.xpose.msra.mxu0 0.0
    %1526 = vmatprep.subr.mxu0 0.0
    %1527 = vmatpush1.xpose.msra.mxu0 0.0
    %1528 = vmatprep.subr.mxu0 0.0
    %1529 = vmatpush1.xpose.msra.mxu0 0.0
    %1530 = vmatprep.subr.mxu0 0.0
    %1531 = vmatpush1.xpose.msra.mxu0 0.0
    %1532 = vmatprep.subr.mxu0 0.0
    %1533 = vmatpush1.xpose.msra.mxu0 0.0
    %1534 = vmatprep.subr.mxu0 0.0
    %1535 = vmatpush1.xpose.msra.mxu0 0.0
    %1536 = vmatprep.mubr.f32.mxu0 0.0
    %1537 = vmatmul.mubr.f32.gmra.mrb[0].mxu0 %v1467
    %v1538 = vpop.f32.mrb[0].mxu0
    %v1539 = vadd.f32 0.0, %v1538
    %v1540 = vpop.f32.mrb[0].mxu0
    %1541 = vdwg.mxu0
    %1542 = vmatprep.subr.mxu0 0.0
    %1543 = vmatpush1.xpose.msra.mxu0 %v1394
    %1544 = vmatprep.subr.mxu0 0.0
    %1545 = vmatpush1.xpose.msra.mxu0 0.0
    %1546 = vmatprep.subr.mxu0 0.0
    %1547 = vmatpush1.xpose.msra.mxu0 0.0
    %1548 = vmatprep.subr.mxu0 0.0
    %1549 = vmatpush1.xpose.msra.mxu0 0.0
    %1550 = vmatprep.subr.mxu0 0.0
    %1551 = vmatpush1.xpose.msra.mxu0 0.0
    %1552 = vmatprep.subr.mxu0 0.0
    %1553 = vmatpush1.xpose.msra.mxu0 0.0
    %1554 = vmatprep.subr.mxu0 0.0
    %1555 = vmatpush1.xpose.msra.mxu0 0.0
    %1556 = vmatprep.subr.mxu0 0.0
    %1557 = vmatpush1.xpose.msra.mxu0 0.0
    %1558 = vmatprep.subr.mxu0 0.0
    %1559 = vmatpush1.xpose.msra.mxu0 0.0
    %1560 = vmatprep.subr.mxu0 0.0
    %1561 = vmatpush1.xpose.msra.mxu0 0.0
    %1562 = vmatprep.subr.mxu0 0.0
    %1563 = vmatpush1.xpose.msra.mxu0 0.0
    %1564 = vmatprep.subr.mxu0 0.0
    %1565 = vmatpush1.xpose.msra.mxu0 0.0
    %1566 = vmatprep.subr.mxu0 0.0
    %1567 = vmatpush1.xpose.msra.mxu0 0.0
    %1568 = vmatprep.subr.mxu0 0.0
    %1569 = vmatpush1.xpose.msra.mxu0 0.0
    %1570 = vmatprep.subr.mxu0 0.0
    %1571 = vmatpush1.xpose.msra.mxu0 0.0
    %1572 = vmatprep.subr.mxu0 0.0
    %1573 = vmatpush1.xpose.msra.mxu0 0.0
    %1574 = vmatprep.subr.mxu0 0.0
    %1575 = vmatpush1.xpose.msra.mxu0 0.0
    %1576 = vmatprep.subr.mxu0 0.0
    %1577 = vmatpush1.xpose.msra.mxu0 0.0
    %1578 = vmatprep.subr.mxu0 0.0
    %1579 = vmatpush1.xpose.msra.mxu0 0.0
    %1580 = vmatprep.subr.mxu0 0.0
    %1581 = vmatpush1.xpose.msra.mxu0 0.0
    %1582 = vmatprep.subr.mxu0 0.0
    %1583 = vmatpush1.xpose.msra.mxu0 0.0
    %1584 = vmatprep.subr.mxu0 0.0
    %1585 = vmatpush1.xpose.msra.mxu0 0.0
    %1586 = vmatprep.subr.mxu0 0.0
    %1587 = vmatpush1.xpose.msra.mxu0 0.0
    %1588 = vmatprep.subr.mxu0 0.0
    %1589 = vmatpush1.xpose.msra.mxu0 0.0
    %1590 = vmatprep.subr.mxu0 0.0
    %1591 = vmatpush1.xpose.msra.mxu0 0.0
    %1592 = vmatprep.subr.mxu0 0.0
    %1593 = vmatpush1.xpose.msra.mxu0 0.0
    %1594 = vmatprep.subr.mxu0 0.0
    %1595 = vmatpush1.xpose.msra.mxu0 0.0
    %1596 = vmatprep.subr.mxu0 0.0
    %1597 = vmatpush1.xpose.msra.mxu0 0.0
    %1598 = vmatprep.subr.mxu0 0.0
    %1599 = vmatpush1.xpose.msra.mxu0 0.0
    %1600 = vmatprep.subr.mxu0 0.0
    %1601 = vmatpush1.xpose.msra.mxu0 0.0
    %1602 = vmatprep.subr.mxu0 0.0
    %1603 = vmatpush1.xpose.msra.mxu0 0.0
    %1604 = vmatprep.subr.mxu0 0.0
    %1605 = vmatpush1.xpose.msra.mxu0 0.0
    %1606 = vmatprep.mubr.f32.mxu0 0.0
    %1607 = vmatmul.mubr.f32.gmra.mrb[0].mxu0 %v1467
    %v1608 = vpop.f32.mrb[0].mxu0
    %v1609 = vadd.f32 0.0, %v1608
    %v1610 = vpop.f32.mrb[0].mxu0
    %1611 = vdwg.mxu0
    %v1612 = vstv %s1392
    %v1613 = vmul.f32 %v1463, %v1612
    %v1614 = vmul.f32 %v1539, %v1612
    %v1615 = vmul.f32 %v1609, %v1612
    %vm1616 = vcmask 64512
    %v1617 = vsel %vm1616, %v1613, -inf
    %1618 = vmax.xlane.f32.xlu0 %v1617
    %v1619 = vpop.xlane.xlu0 %1618
    %v1620 = vsel %vm1616, %v1614, -inf
    %1621 = vmax.xlane.f32.xlu0 %v1620
    %v1622 = vpop.xlane.xlu0 %1621
    %v1623 = vsel %vm1616, %v1615, -inf
    %1624 = vmax.xlane.f32.xlu0 %v1623
    %v1625 = vpop.xlane.xlu0 %1624
    %v1626 = vsub.f32 %v1613, %v1619
    %v1627 = vsub.f32 %v1614, %v1622
    %v1628 = vsub.f32 %v1615, %v1625
    %v1629 = vmul.f32 %v1626, 1.442695
    %v1630 = vpow.pop %v1629
    %v1631 = vmul.f32 %v1627, 1.442695
    %v1632 = vpow.pop %v1631
    %v1633 = vmul.f32 %v1628, 1.442695
    %v1634 = vpow.pop %v1633
    %v1635 = vsel %vm1616, %v1630, 0.0
    %1636 = vadd.xlane.f32.xlu0 %v1635
    %v1637 = vpop.xlane.xlu0 %1636
    %v1638 = vsel %vm1616, %v1632, 0.0
    %1639 = vadd.xlane.f32.xlu0 %v1638
    %v1640 = vpop.xlane.xlu0 %1639
    %v1641 = vsel %vm1616, %v1634, 0.0
    %1642 = vadd.xlane.f32.xlu0 %v1641
    %v1643 = vpop.xlane.xlu0 %1642
    %v1644 = vlog2.pop %v1637
    %v1645 = vmul.f32 %v1644, 0.6931472
    %v1646 = vlog2.pop %v1640
    %v1647 = vmul.f32 %v1646, 0.6931472
    %v1648 = vlog2.pop %v1643
    %v1649 = vmul.f32 %v1648, 0.6931472
    %v1650 = vadd.f32 %v1619, %v1645
    %v1651 = vadd.f32 %v1622, %v1647
    %v1652 = vadd.f32 %v1625, %v1649
    %v1653 = vrot.slane %v1617, 4
    %v1654 = vmax.f32 %v1617, %v1653
    %v1655 = vrot.slane %v1654, 2
    %v1656 = vmax.f32 %v1654, %v1655
    %v1657 = vrot.slane %v1656, 1
    %v1658 = vmax.f32 %v1656, %v1657
    %v1659 = vrot.slane %v1620, 4
    %v1660 = vmax.f32 %v1620, %v1659
    %v1661 = vrot.slane %v1660, 2
    %v1662 = vmax.f32 %v1660, %v1661
    %v1663 = vrot.slane %v1662, 1
    %v1664 = vmax.f32 %v1662, %v1663
    %v1665 = vrot.slane %v1623, 4
    %v1666 = vmax.f32 %v1623, %v1665
    %v1667 = vrot.slane %v1666, 2
    %v1668 = vmax.f32 %v1666, %v1667
    %v1669 = vrot.slane %v1668, 1
    %v1670 = vmax.f32 %v1668, %v1669
    %v1671 = vsub.f32 %v1613, %v1658
    %v1672 = vsub.f32 %v1614, %v1664
    %v1673 = vsub.f32 %v1615, %v1670
    %v1674 = vmul.f32 %v1671, 1.442695
    %v1675 = vpow.pop %v1674
    %v1676 = vmul.f32 %v1672, 1.442695
    %v1677 = vpow.pop %v1676
    %v1678 = vmul.f32 %v1673, 1.442695
    %v1679 = vpow.pop %v1678
    %v1680 = vsel %vm1616, %v1675, 0.0
    %v1681 = vrot.slane %v1680, 4
    %v1682 = vadd.f32 %v1680, %v1681
    %v1683 = vrot.slane %v1682, 2
    %v1684 = vadd.f32 %v1682, %v1683
    %v1685 = vrot.slane %v1684, 1
    %v1686 = vadd.f32 %v1684, %v1685
    %v1687 = vsel %vm1616, %v1677, 0.0
    %v1688 = vrot.slane %v1687, 4
    %v1689 = vadd.f32 %v1687, %v1688
    %v1690 = vrot.slane %v1689, 2
    %v1691 = vadd.f32 %v1689, %v1690
    %v1692 = vrot.slane %v1691, 1
    %v1693 = vadd.f32 %v1691, %v1692
    %v1694 = vsel %vm1616, %v1679, 0.0
    %v1695 = vrot.slane %v1694, 4
    %v1696 = vadd.f32 %v1694, %v1695
    %v1697 = vrot.slane %v1696, 2
    %v1698 = vadd.f32 %v1696, %v1697
    %v1699 = vrot.slane %v1698, 1
    %v1700 = vadd.f32 %v1698, %v1699
    %v1701 = vlog2.pop %v1686
    %v1702 = vmul.f32 %v1701, 0.6931472
    %v1703 = vlog2.pop %v1693
    %v1704 = vmul.f32 %v1703, 0.6931472
    %v1705 = vlog2.pop %v1700
    %v1706 = vmul.f32 %v1705, 0.6931472
    %v1707 = vadd.f32 %v1658, %v1702
    %v1708 = vadd.f32 %v1664, %v1704
    %v1709 = vadd.f32 %v1670, %v1706
    %v1710 = vlaneseq
    %v1711 = vshrl.u32 %v1710, 7
    %v1712 = vlaneseq
    %v1713 = vand.u32 %v1712, 127
    %vm1714 = vcmp.eq.s32.totalorder %v1711, %v1713
    %v1715 = vsel %vm1714, %v1613, 0.0
    %v1716 = vsel %vm1714, %v1614, 0.0
    %v1717 = vsel %vm1714, %v1615, 0.0
    %v1718 = vsel %vm1616, %v1715, 0.0
    %1719 = vadd.xlane.f32.xlu0 %v1718
    %v1720 = vpop.xlane.xlu0 %1719
    %v1721 = vsel %vm1616, %v1716, 0.0
    %1722 = vadd.xlane.f32.xlu0 %v1721
    %v1723 = vpop.xlane.xlu0 %1722
    %v1724 = vsel %vm1616, %v1717, 0.0
    %1725 = vadd.xlane.f32.xlu0 %v1724
    %v1726 = vpop.xlane.xlu0 %1725
    %v1727 = vsub.f32 %v1650, %v1720
    %v1728 = vsub.f32 %v1651, %v1723
    %v1729 = vsub.f32 %v1652, %v1726
    %vm1730 = vcmask 7168
    %v1731 = vsel %vm1730, %v1727, 0.0
    %v1732 = vsel %vm1730, %v1728, 0.0
    %v1733 = vadd.f32 %v1731, %v1732
    %v1734 = vsel %vm1730, %v1729, 0.0
    %v1735 = vadd.f32 %v1733, %v1734
    %1736 = vadd.xlane.f32.xlu0 %v1735
    %v1737 = vpop.xlane.xlu0 %1736
    %v1738 = vrot.slane %v1737, 4
    %v1739 = vadd.f32 %v1737, %v1738
    %v1740 = vrot.slane %v1739, 2
    %v1741 = vadd.f32 %v1739, %v1740
    %v1742 = vrot.slane %v1741, 1
    %v1743 = vadd.f32 %v1741, %v1742
    %s1744 = vtos %v1743
    %v1745 = vrcp.pop 8.0
    %s1746 = vtos %v1745
    %s1747 = smul.f32 %s1744, %s1746
    %v1748 = vrot.slane %v1718, 4
    %v1749 = vadd.f32 %v1718, %v1748
    %v1750 = vrot.slane %v1749, 2
    %v1751 = vadd.f32 %v1749, %v1750
    %v1752 = vrot.slane %v1751, 1
    %v1753 = vadd.f32 %v1751, %v1752
    %v1754 = vrot.slane %v1721, 4
    %v1755 = vadd.f32 %v1721, %v1754
    %v1756 = vrot.slane %v1755, 2
    %v1757 = vadd.f32 %v1755, %v1756
    %v1758 = vrot.slane %v1757, 1
    %v1759 = vadd.f32 %v1757, %v1758
    %v1760 = vrot.slane %v1724, 4
    %v1761 = vadd.f32 %v1724, %v1760
    %v1762 = vrot.slane %v1761, 2
    %v1763 = vadd.f32 %v1761, %v1762
    %v1764 = vrot.slane %v1763, 1
    %v1765 = vadd.f32 %v1763, %v1764
    %v1766 = vsub.f32 %v1707, %v1753
    %v1767 = vsub.f32 %v1708, %v1759
    %v1768 = vsub.f32 %v1709, %v1765
    %vm1769 = vcmask 57344
    %v1770 = vsel %vm1769, %v1766, 0.0
    %v1771 = vsel %vm1769, %v1767, 0.0
    %v1772 = vadd.f32 %v1770, %v1771
    %v1773 = vsel %vm1769, %v1768, 0.0
    %v1774 = vadd.f32 %v1772, %v1773
    %1775 = vadd.xlane.f32.xlu0 %v1774
    %v1776 = vpop.xlane.xlu0 %1775
    %v1777 = vrot.slane %v1776, 4
    %v1778 = vadd.f32 %v1776, %v1777
    %v1779 = vrot.slane %v1778, 2
    %v1780 = vadd.f32 %v1778, %v1779
    %v1781 = vrot.slane %v1780, 1
    %v1782 = vadd.f32 %v1780, %v1781
    %s1783 = vtos %v1782
    %v1784 = vrcp.pop 8.0
    %s1785 = vtos %v1784
    %s1786 = smul.f32 %s1783, %s1785
    %s1787 = sadd.f32 %s1747, %s1786
    %s1788 = smul.f32 %s1787, 0.5
    %s1789 = scalar_lea.smem [#allocation9], 0
    %1790 = sst [smem:[%s1789]] %s1788
    // Predicated region
    $region30: #{contrastive_model_forward.1} parent=1 // pred_check
      _
    $region31: #{contrastive_model_forward.1} parent=1 // pred_check_branch
      %1792 = sbr.rel (0) target = $region33
    $region32: #{contrastive_model_forward.1} parent=1 // pred_region
      %s1794 = ssub.s32 128, 128
      %1795 = vsyncadd [#allocation4], %s1794
      %s1797 = sshll.u32 [#allocation3], 4
      %s1798 = int_to_ptr.vmem [resolvable:$true] %s1797
      %1800 = dma.vmem_to_hbm [thread:$0]  %s1798, 128, %s7, [#allocation4]
    $region33: #{contrastive_model_forward.1} parent=1 // pred_fallthru
      _
    // Predicated region
    $region34: #{contrastive_model_forward.1} parent=1 // pred_check
      _
    $region35: #{contrastive_model_forward.1} parent=1 // pred_check_branch
      %1802 = sbr.rel (0) target = $region37
    $region36: #{contrastive_model_forward.1} parent=1 // pred_region
      %s1804 = ssub.s32 128, 128
      %1805 = vsyncadd [#allocation7], %s1804
      %s1807 = sshll.u32 [#allocation6], 4
      %s1808 = int_to_ptr.vmem [resolvable:$true] %s1807
      %1810 = dma.vmem_to_hbm [thread:$0]  %s1808, 128, %s8, [#allocation7]
    $region37: #{contrastive_model_forward.1} parent=1 // pred_fallthru
      _
    // Predicated region
    $region38: #{contrastive_model_forward.1} parent=1 // pred_check
      _
    $region39: #{contrastive_model_forward.1} parent=1 // pred_check_branch
      %1812 = sbr.rel (0) target = $region41
    $region40: #{contrastive_model_forward.1} parent=1 // pred_region
      %s1814 = ssub.s32 128, 128
      %1815 = vsyncadd [#allocation7], %s1814
      %s1817 = sshll.u32 [#allocation8], 4
      %s1818 = int_to_ptr.vmem [resolvable:$true] %s1817
      %1820 = dma.vmem_to_hbm [thread:$0]  %s1818, 128, %s9, [#allocation7]
    $region41: #{contrastive_model_forward.1} parent=1 // pred_fallthru
      _
    // Predicated region
    $region42: #{contrastive_model_forward.1} parent=1 // pred_check
      _
    $region43: #{contrastive_model_forward.1} parent=1 // pred_check_branch
      %1822 = sbr.rel (0) target = $region45
    $region44: #{contrastive_model_forward.1} parent=1 // pred_region
      %s1824 = ssub.s32 16, 16
      %1825 = vsyncadd [#allocation5], %s1824
      %1828 = dma.smem_to_hbm [#allocation9], 16, %s10, [#allocation5]
    $region45: #{contrastive_model_forward.1} parent=1 // pred_fallthru
      _
    // Predicated region
    $region46: #{contrastive_model_forward.1} parent=1 // pred_check
      _
    $region47: #{contrastive_model_forward.1} parent=1 // pred_check_branch
      %1830 = sbr.rel (0) target = $region49
    $region48: #{contrastive_model_forward.1} parent=1 // pred_region
      %1831 = dma.done [#allocation4], 128
    $region49: #{contrastive_model_forward.1} parent=1 // pred_fallthru
      _
    // Predicated region
    $region50: #{contrastive_model_forward.1} parent=1 // pred_check
      _
    $region51: #{contrastive_model_forward.1} parent=1 // pred_check_branch
      %1833 = sbr.rel (0) target = $region53
    $region52: #{contrastive_model_forward.1} parent=1 // pred_region
      %1834 = dma.done [#allocation7], 128
    $region53: #{contrastive_model_forward.1} parent=1 // pred_fallthru
      _
    // Predicated region
    $region54: #{contrastive_model_forward.1} parent=1 // pred_check
      _
    $region55: #{contrastive_model_forward.1} parent=1 // pred_check_branch
      %1836 = sbr.rel (0) target = $region57
    $region56: #{contrastive_model_forward.1} parent=1 // pred_region
      %1837 = dma.done [#allocation7], 128
    $region57: #{contrastive_model_forward.1} parent=1 // pred_fallthru
      _
    // Predicated region
    $region58: #{contrastive_model_forward.1} parent=1 // pred_check
      _
    $region59: #{contrastive_model_forward.1} parent=1 // pred_check_branch
      %1839 = sbr.rel (0) target = $region61
    $region60: #{contrastive_model_forward.1} parent=1 // pred_region
      %1840 = dma.done [#allocation5], 16
    $region61: #{contrastive_model_forward.1} parent=1 // pred_fallthru
      _
    %1841 = sfence
    %1842 = vsyncpa [#allocation4], 1
    %1843 = vsyncpa [#allocation7], 1
    %1844 = vsyncpa [#allocation5], 1

</llo_original>
